<compile_context>
chip_gen: v7x
topology: tpu7x:2x2x1
jax: 0.10.0
libtpu: 0.0.40
codegen_flags: <defaults>
</compile_context>

<pallas_src>
import functools

import jax
import jax.numpy as jnp
from jax.experimental import pallas as pl
from jax.experimental.pallas import tpu as pltpu


# -----------------------------------------------------------------------------
# Pallas kernel: o = act((x @ w) * scale + bias), accumulating over the k axis
# -----------------------------------------------------------------------------
def _matmul_bn_act_kernel(x_ref, w_ref, s_ref, b_ref, o_ref, acc_ref, *, relu):
    @pl.when(pl.program_id(2) == 0)
    def _():
        acc_ref[...] = jnp.zeros_like(acc_ref)

    acc_ref[...] += jnp.dot(x_ref[...], w_ref[...],
                            preferred_element_type=jnp.float32)

    @pl.when(pl.program_id(2) == pl.num_programs(2) - 1)
    def _():
        y = acc_ref[...] * s_ref[...] + b_ref[...]
        if relu:
            y = jnp.maximum(y, 0.0)
        o_ref[...] = y.astype(o_ref.dtype)


# -----------------------------------------------------------------------------
# Tiling helpers + cached pallas_call builder
# -----------------------------------------------------------------------------
def _round_up(x, m):
    return ((x + m - 1) // m) * m


def _pad_and_tile(dim, base, tile_max):
    """Pad `dim` to a TPU-friendly size and pick a tile that divides it."""
    if dim <= tile_max:
        p = _round_up(dim, base)
        return p, p
    p = _round_up(dim, tile_max)
    return p, tile_max


@functools.lru_cache(maxsize=None)
def _get_matmul_call(Mp, Kp, Np, tm, tk, tn, relu):
    kernel = functools.partial(_matmul_bn_act_kernel, relu=relu)
    return pl.pallas_call(
        kernel,
        out_shape=jax.ShapeDtypeStruct((Mp, Np), jnp.float32),
        grid_spec=pltpu.PrefetchScalarGridSpec(
            num_scalar_prefetch=0,
            grid=(Mp // tm, Np // tn, Kp // tk),
            in_specs=[
                pl.BlockSpec((tm, tk), lambda i, j, k: (i, k)),   # X  (bf16)
                pl.BlockSpec((tk, tn), lambda i, j, k: (k, j)),   # W  (bf16)
                pl.BlockSpec((1, tn), lambda i, j, k: (0, j)),    # scale (f32)
                pl.BlockSpec((1, tn), lambda i, j, k: (0, j)),    # bias  (f32)
            ],
            out_specs=pl.BlockSpec((tm, tn), lambda i, j, k: (i, j)),
            scratch_shapes=[pltpu.VMEM((tm, tn), jnp.float32)]),
        compiler_params=pltpu.CompilerParams(
            dimension_semantics=("parallel", "parallel", "arbitrary")),
    )


# -----------------------------------------------------------------------------
# Parameters: deterministic synthetic init + one-time preparation (hoisted prep)
# -----------------------------------------------------------------------------
def _init_bn(key, n):
    k1, k2, k3, k4 = jax.random.split(key, 4)
    gamma = 1.0 + 0.1 * jax.random.normal(k1, (n,), jnp.float32)
    beta = 0.1 * jax.random.normal(k2, (n,), jnp.float32)
    mean = 0.1 * jax.random.normal(k3, (n,), jnp.float32)
    var = 1.0 + 0.1 * jax.random.uniform(k4, (n,), jnp.float32)
    return gamma, beta, mean, var


def _bn_fold(gamma, beta, mean, var, eps=1e-3):
    s = gamma / jnp.sqrt(var + eps)
    return s, beta - mean * s


def init_raw_params(key, in_features, hidden, num_classes):
    k1, k2, k3, k4, k5 = jax.random.split(key, 5)
    fc1_w = jax.random.normal(k1, (hidden, in_features), jnp.float32) / jnp.sqrt(
        float(in_features))
    fc1_b = 0.01 * jax.random.normal(k2, (hidden,), jnp.float32)
    # fc2 exists in __init__ but is unused in forward; kept only for fidelity.
    fc2_w = jax.random.normal(k4, (num_classes, hidden), jnp.float32) / jnp.sqrt(
        float(hidden))
    fc2_b = 0.01 * jax.random.normal(k5, (num_classes,), jnp.float32)
    return {
        'fc1': {'w': fc1_w, 'b': fc1_b, 'bn': _init_bn(k3, hidden)},
        'fc2': {'w': fc2_w, 'b': fc2_b},
    }


def prepare_params(raw, *, k_cap=2048, n_cap=1024):
    """Fold BN, transpose, pad and cast the fc1 weight ONCE (not per forward)."""
    w = raw['fc1']['w']                      # PyTorch layout (out, in)
    b = raw['fc1']['b']
    s, sb = _bn_fold(*raw['fc1']['bn'])      # y = s * (x W^T + b) + sb
    scale = s
    bias = s * b + sb

    N, K = w.shape
    Kp, tk = _pad_and_tile(K, 128, k_cap)
    Np, tn = _pad_and_tile(N, 128, n_cap)

    w_t = jnp.pad(w.T, ((0, Kp - K), (0, Np - N))).astype(jnp.bfloat16)
    s_p = jnp.pad(scale[None, :], ((0, 0), (0, Np - N))).astype(jnp.float32)
    b_p = jnp.pad(bias[None, :], ((0, 0), (0, Np - N))).astype(jnp.float32)

    return {'w': w_t, 'scale': s_p, 'bias': b_p,
            'K': K, 'N': N, 'Kp': Kp, 'Np': Np, 'tk': tk, 'tn': tn}


# -----------------------------------------------------------------------------
# Forward (single fused Pallas kernel, single jit dispatch)
# -----------------------------------------------------------------------------
def make_image_embeddings_forward(prepared):
    w_t = prepared['w']
    s_p = prepared['scale']
    b_p = prepared['bias']
    K, N = prepared['K'], prepared['N']
    Kp, Np = prepared['Kp'], prepared['Np']
    tk, tn = prepared['tk'], prepared['tn']

    def forward(i, tt, it):
        # ImageEmbeddings.forward:  x = self.fc1(i); return x   (tt / it / fc2 unused)
        del tt, it
        x = i.astype(jnp.bfloat16)
        M = x.shape[0]
        Mp, tm = _pad_and_tile(M, 8, 256)
        xp = jnp.pad(x, ((0, Mp - M), (0, Kp - K)))
        out = _get_matmul_call(Mp, Kp, Np, tm, tk, tn, True)(xp, w_t, s_p, b_p)
        return out[:M, :N]

    return jax.jit(forward)


# -----------------------------------------------------------------------------
if __name__ == "__main__":
    key = jax.random.PRNGKey(0)
    k_par, k_i, k_tt, k_it = jax.random.split(key, 4)

    B = 2
    IN_FEATURES = 2048
    HIDDEN = 200
    NUM_CLASSES = 4
    LSTM_DIM = 32

    i = jax.random.normal(k_i, (B, IN_FEATURES), jnp.float32)
    tt = jax.random.normal(k_tt, (B, LSTM_DIM), jnp.float32)
    it = jax.random.normal(k_it, (B, LSTM_DIM), jnp.float32)

    raw = init_raw_params(k_par, IN_FEATURES, HIDDEN, NUM_CLASSES)
    prepared = prepare_params(raw)
    forward = make_image_embeddings_forward(prepared)

    out = forward(i, tt, it)
    out = jax.block_until_ready(out)

    assert out.shape == (B, HIDDEN), out.shape
    assert bool(jnp.all(jnp.isfinite(out)))
    assert bool(jnp.all(out >= 0.0))           # ReLU output

    # Plain-JAX f32 reference (bf16 operands -> loose tolerance).
    gamma, beta, mean, var = raw['fc1']['bn']
    ref = i @ raw['fc1']['w'].T + raw['fc1']['b']
    ref = (ref - mean) / jnp.sqrt(var + 1e-3) * gamma + beta
    ref = jnp.maximum(ref, 0.0)
    rel_err = float(jnp.max(jnp.abs(out - ref)) / (jnp.max(jnp.abs(ref)) + 1e-6))
    assert rel_err < 5e-2, rel_err

    print("KERNEL_OK")
</pallas_src>

<mosaic_0001>
module attributes {stable_mosaic.version = 11 : i64} {
  func.func @_matmul_bn_act_kernel(%arg0: i32, %arg1: i32, %arg2: i32, %arg3: memref<8x2048xbf16, #tpu.memory_space<vmem>>, %arg4: memref<2048x256xbf16, #tpu.memory_space<vmem>>, %arg5: memref<1x256xf32, #tpu.memory_space<vmem>>, %arg6: memref<1x256xf32, #tpu.memory_space<vmem>>, %arg7: memref<8x256xf32, #tpu.memory_space<vmem>>, %arg8: memref<8x256xf32, #tpu.memory_space<vmem>>) attributes {dimension_semantics = [#tpu.dimension_semantics<parallel>, #tpu.dimension_semantics<parallel>, #tpu.dimension_semantics<arbitrary>], iteration_bounds = array<i64: 1, 1, 1>, scalar_prefetch = 0 : i64, scratch_operands = 1 : i64, tpu.core_type = #tpu.core_type<tc>, window_params = [{transform_indices = @transform_0, window_bounds = array<i64: 8, 2048>}, {transform_indices = @transform_1, window_bounds = array<i64: 2048, 256>}, {transform_indices = @transform_2, window_bounds = array<i64: 1, 256>}, {transform_indices = @transform_3, window_bounds = array<i64: 1, 256>}, {transform_indices = @transform_4, window_bounds = array<i64: 8, 256>}]} {
    %c0_i32 = arith.constant 0 : i32
    %0 = arith.cmpi eq, %arg2, %c0_i32 : i32
    %1 = arith.extui %0 : i1 to i32
    %c0_i32_0 = arith.constant 0 : i32
    %2 = arith.cmpi ne, %1, %c0_i32_0 : i32
    scf.if %2 {
      %cst_10 = arith.constant 0.000000e+00 : f32
      %12 = vector.broadcast %cst_10 : f32 to vector<8x256xf32>
      %c0_11 = arith.constant 0 : index
      %c0_12 = arith.constant 0 : index
      %13 = vector.load %arg8[%c0_11, %c0_12] : memref<8x256xf32, #tpu.memory_space<vmem>>, vector<8x256xf32>
      tpu.vector_store %arg8[%c0_11, %c0_12], %12 {strides = array<i32>} : memref<8x256xf32, #tpu.memory_space<vmem>>, vector<8x256xf32>,
    } else {
    }
    %c0 = arith.constant 0 : index
    %c0_1 = arith.constant 0 : index
    %3 = vector.load %arg8[%c0, %c0_1] : memref<8x256xf32, #tpu.memory_space<vmem>>, vector<8x256xf32>
    %c0_2 = arith.constant 0 : index
    %c0_3 = arith.constant 0 : index
    %4 = vector.load %arg3[%c0_2, %c0_3] : memref<8x2048xbf16, #tpu.memory_space<vmem>>, vector<8x2048xbf16>
    %c0_4 = arith.constant 0 : index
    %c0_5 = arith.constant 0 : index
    %5 = vector.load %arg4[%c0_4, %c0_5] : memref<2048x256xbf16, #tpu.memory_space<vmem>>, vector<2048x256xbf16>
    %cst = arith.constant dense<0.000000e+00> : vector<8x256xf32>
    %6 = tpu.matmul %4, %5, %cst {dimension_numbers = #tpu.dot_dimension_numbers<[1], [0], [0], [1], [0, 0, 1, 1], [], []>} : vector<8x2048xbf16>, vector<2048x256xbf16>, vector<8x256xf32> -> vector<8x256xf32>
    %7 = arith.addf %3, %6 : vector<8x256xf32>
    %c0_6 = arith.constant 0 : index
    %c0_7 = arith.constant 0 : index
    %8 = vector.load %arg8[%c0_6, %c0_7] : memref<8x256xf32, #tpu.memory_space<vmem>>, vector<8x256xf32>
    tpu.vector_store %arg8[%c0_6, %c0_7], %7 {strides = array<i32>} : memref<8x256xf32, #tpu.memory_space<vmem>>, vector<8x256xf32>,
    %c0_i32_8 = arith.constant 0 : i32
    %9 = arith.cmpi eq, %arg2, %c0_i32_8 : i32
    %10 = arith.extui %9 : i1 to i32
    %c0_i32_9 = arith.constant 0 : i32
    %11 = arith.cmpi ne, %10, %c0_i32_9 : i32
    scf.if %11 {
      %c0_10 = arith.constant 0 : index
      %c0_11 = arith.constant 0 : index
      %12 = vector.load %arg8[%c0_10, %c0_11] : memref<8x256xf32, #tpu.memory_space<vmem>>, vector<8x256xf32>
      %c0_12 = arith.constant 0 : index
      %c0_13 = arith.constant 0 : index
      %13 = vector.load %arg5[%c0_12, %c0_13] : memref<1x256xf32, #tpu.memory_space<vmem>>, vector<1x256xf32>
      %14 = vector.broadcast %13 : vector<1x256xf32> to vector<8x256xf32>
      %15 = arith.mulf %12, %14 : vector<8x256xf32>
      %c0_14 = arith.constant 0 : index
      %c0_15 = arith.constant 0 : index
      %16 = vector.load %arg6[%c0_14, %c0_15] : memref<1x256xf32, #tpu.memory_space<vmem>>, vector<1x256xf32>
      %17 = vector.broadcast %16 : vector<1x256xf32> to vector<8x256xf32>
      %18 = arith.addf %15, %17 : vector<8x256xf32>
      %cst_16 = arith.constant 0.000000e+00 : f32
      %19 = vector.broadcast %cst_16 : f32 to vector<8x256xf32>
      %20 = arith.maximumf %18, %19 : vector<8x256xf32>
      %c0_17 = arith.constant 0 : index
      %c0_18 = arith.constant 0 : index
      %21 = vector.load %arg7[%c0_17, %c0_18] : memref<8x256xf32, #tpu.memory_space<vmem>>, vector<8x256xf32>
      tpu.vector_store %arg7[%c0_17, %c0_18], %20 {strides = array<i32>} : memref<8x256xf32, #tpu.memory_space<vmem>>, vector<8x256xf32>,
    } else {
    }
    return
  }
  func.func @transform_0(%arg0: i32, %arg1: i32, %arg2: i32) -> (i32, i32) {
    %c0_i32 = arith.constant 0 : i32
    return %arg0, %arg2 : i32, i32
  }
  func.func @transform_1(%arg0: i32, %arg1: i32, %arg2: i32) -> (i32, i32) {
    %c0_i32 = arith.constant 0 : i32
    return %arg2, %arg1 : i32, i32
  }
  func.func @transform_2(%arg0: i32, %arg1: i32, %arg2: i32) -> (i32, i32) {
    %c0_i32 = arith.constant 0 : i32
    %c0_i32_0 = arith.constant 0 : i32
    return %c0_i32, %arg1 : i32, i32
  }
  func.func @transform_3(%arg0: i32, %arg1: i32, %arg2: i32) -> (i32, i32) {
    %c0_i32 = arith.constant 0 : i32
    %c0_i32_0 = arith.constant 0 : i32
    return %c0_i32, %arg1 : i32, i32
  }
  func.func @transform_4(%arg0: i32, %arg1: i32, %arg2: i32) -> (i32, i32) {
    %c0_i32 = arith.constant 0 : i32
    return %arg0, %arg1 : i32, i32
  }
}

</mosaic_0001>

<llo_original>
// kernel: forward.1
$region0: #{forward.1}
  #allocation0 [shape = 'u32[]', space=smem, size = 0x4, offset = 0x4, fixed_abs, tag = 'smem constant byte address 0x4 - core index']
  #allocation1 [shape = 'u32[144,128]{1,0:T(1,128)}', space=vmem, size = 0x12000, scoped, tag = 'internal scratch']
  #allocation2 [shape = 'f32[8,256]{1,0:T(8,128)}', space=vmem, size = 0x2000, scoped, tag = 'scratch operand']
  %s0 = inlined_call_operand.vmem [shape: bf16[8,2048], index: 0, kind: input, shape index: {}]
  %s1 = inlined_call_operand.vmem [shape: bf16[2048,256], index: 1, kind: input, shape index: {}]
  %s2 = inlined_call_operand.vmem [shape: f32[1,256], index: 2, kind: input, shape index: {}]
  %s3 = inlined_call_operand.vmem [shape: f32[1,256], index: 3, kind: input, shape index: {}]
  %s4 = inlined_call_operand.vmem [shape: f32[8,256], index: 4, kind: output, shape index: {}]
  %s5 = sld [smem:[#allocation0]]
  $region34: #{forward.1} parent=0
    _
  %s7 = ssub.s32 1, %s5
  %s8 = scalar_select 0, %s7, %s5
  // Predicated region
  $region2: #{forward.1} parent=0 // pred_check
    _
  $region3: #{forward.1} parent=0 // pred_check_branch
    %10 = sbr.rel (0) target = $region5
  $region4: #{forward.1} parent=0 // pred_region
    _
  $region5: #{forward.1} parent=0 // pred_fallthru
    _
  // Predicated region
  $region6: #{forward.1} parent=0 // pred_check
    _
  $region7: #{forward.1} parent=0 // pred_check_branch
    %12 = sbr.rel (0) target = $region9
  $region8: #{forward.1} parent=0 // pred_region
    _
  $region9: #{forward.1} parent=0 // pred_fallthru
    _
  // Predicated region
  $region10: #{forward.1} parent=0 // pred_check
    _
  $region11: #{forward.1} parent=0 // pred_check_branch
    %14 = sbr.rel (0) target = $region13
  $region12: #{forward.1} parent=0 // pred_region
    _
  $region13: #{forward.1} parent=0 // pred_fallthru
    _
  // Predicated region
  $region14: #{forward.1} parent=0 // pred_check
    _
  $region15: #{forward.1} parent=0 // pred_check_branch
    %16 = sbr.rel (0) target = $region17
  $region16: #{forward.1} parent=0 // pred_region
    _
  $region17: #{forward.1} parent=0 // pred_fallthru
    _
  %p17 = scmp.eq.s32.totalorder 0, 0
  // Predicated region
  $region18: #{forward.1} parent=0 // pred_check
    %p18 = pneg %p17
  $region19: #{forward.1} parent=0 // pred_check_branch
    %20 = sbr.rel (%p18) target = $region21
  $region20: #{forward.1} parent=0 // pred_region
    %21 = vst [vmem:[#allocation2] sm:$0xff] 0.0
    %22 = vst [vmem:[#allocation2 + $0x8] sm:$0xff] 0.0
  $region21: #{forward.1} parent=0 // pred_fallthru
    _
  %v23 = vld [vmem:[#allocation2] sm:$0xff]
  %v24 = vld [vmem:[#allocation2 + $0x8] sm:$0xff]
  %v25 = vld [vmem:[%s0] sm:$0xff]
  %v26 = vld [vmem:[%s0 + $0x8] sm:$0xff]
  %v27 = vld [vmem:[%s0 + $0x10] sm:$0xff]
  %v28 = vld [vmem:[%s0 + $0x18] sm:$0xff]
  %v29 = vld [vmem:[%s0 + $0x20] sm:$0xff]
  %v30 = vld [vmem:[%s0 + $0x28] sm:$0xff]
  %v31 = vld [vmem:[%s0 + $0x30] sm:$0xff]
  %v32 = vld [vmem:[%s0 + $0x38] sm:$0xff]
  %v33 = vld [vmem:[%s1] sm:$0xff]
  %v34 = vld [vmem:[%s1 + $0x8] sm:$0xff]
  %v35 = vld [vmem:[%s1 + $0x10] sm:$0xff]
  %v36 = vld [vmem:[%s1 + $0x18] sm:$0xff]
  %v37 = vld [vmem:[%s1 + $0x20] sm:$0xff]
  %v38 = vld [vmem:[%s1 + $0x28] sm:$0xff]
  %v39 = vld [vmem:[%s1 + $0x30] sm:$0xff]
  %v40 = vld [vmem:[%s1 + $0x38] sm:$0xff]
  %v41 = vld [vmem:[%s1 + $0x40] sm:$0xff]
  %v42 = vld [vmem:[%s1 + $0x48] sm:$0xff]
  %v43 = vld [vmem:[%s1 + $0x50] sm:$0xff]
  %v44 = vld [vmem:[%s1 + $0x58] sm:$0xff]
  %v45 = vld [vmem:[%s1 + $0x60] sm:$0xff]
  %v46 = vld [vmem:[%s1 + $0x68] sm:$0xff]
  %v47 = vld [vmem:[%s1 + $0x70] sm:$0xff]
  %v48 = vld [vmem:[%s1 + $0x78] sm:$0xff]
  %v49 = vld [vmem:[%s1 + $0x80] sm:$0xff]
  %v50 = vld [vmem:[%s1 + $0x88] sm:$0xff]
  %v51 = vld [vmem:[%s1 + $0x90] sm:$0xff]
  %v52 = vld [vmem:[%s1 + $0x98] sm:$0xff]
  %v53 = vld [vmem:[%s1 + $0xa0] sm:$0xff]
  %v54 = vld [vmem:[%s1 + $0xa8] sm:$0xff]
  %v55 = vld [vmem:[%s1 + $0xb0] sm:$0xff]
  %v56 = vld [vmem:[%s1 + $0xb8] sm:$0xff]
  %v57 = vld [vmem:[%s1 + $0xc0] sm:$0xff]
  %v58 = vld [vmem:[%s1 + $0xc8] sm:$0xff]
  %v59 = vld [vmem:[%s1 + $0xd0] sm:$0xff]
  %v60 = vld [vmem:[%s1 + $0xd8] sm:$0xff]
  %v61 = vld [vmem:[%s1 + $0xe0] sm:$0xff]
  %v62 = vld [vmem:[%s1 + $0xe8] sm:$0xff]
  %v63 = vld [vmem:[%s1 + $0xf0] sm:$0xff]
  %v64 = vld [vmem:[%s1 + $0xf8] sm:$0xff]
  %v65 = vld [vmem:[%s1 + $0x100] sm:$0xff]
  %v66 = vld [vmem:[%s1 + $0x108] sm:$0xff]
  %v67 = vld [vmem:[%s1 + $0x110] sm:$0xff]
  %v68 = vld [vmem:[%s1 + $0x118] sm:$0xff]
  %v69 = vld [vmem:[%s1 + $0x120] sm:$0xff]
  %v70 = vld [vmem:[%s1 + $0x128] sm:$0xff]
  %v71 = vld [vmem:[%s1 + $0x130] sm:$0xff]
  %v72 = vld [vmem:[%s1 + $0x138] sm:$0xff]
  %v73 = vld [vmem:[%s1 + $0x140] sm:$0xff]
  %v74 = vld [vmem:[%s1 + $0x148] sm:$0xff]
  %v75 = vld [vmem:[%s1 + $0x150] sm:$0xff]
  %v76 = vld [vmem:[%s1 + $0x158] sm:$0xff]
  %v77 = vld [vmem:[%s1 + $0x160] sm:$0xff]
  %v78 = vld [vmem:[%s1 + $0x168] sm:$0xff]
  %v79 = vld [vmem:[%s1 + $0x170] sm:$0xff]
  %v80 = vld [vmem:[%s1 + $0x178] sm:$0xff]
  %v81 = vld [vmem:[%s1 + $0x180] sm:$0xff]
  %v82 = vld [vmem:[%s1 + $0x188] sm:$0xff]
  %v83 = vld [vmem:[%s1 + $0x190] sm:$0xff]
  %v84 = vld [vmem:[%s1 + $0x198] sm:$0xff]
  %v85 = vld [vmem:[%s1 + $0x1a0] sm:$0xff]
  %v86 = vld [vmem:[%s1 + $0x1a8] sm:$0xff]
  %v87 = vld [vmem:[%s1 + $0x1b0] sm:$0xff]
  %v88 = vld [vmem:[%s1 + $0x1b8] sm:$0xff]
  %v89 = vld [vmem:[%s1 + $0x1c0] sm:$0xff]
  %v90 = vld [vmem:[%s1 + $0x1c8] sm:$0xff]
  %v91 = vld [vmem:[%s1 + $0x1d0] sm:$0xff]
  %v92 = vld [vmem:[%s1 + $0x1d8] sm:$0xff]
  %v93 = vld [vmem:[%s1 + $0x1e0] sm:$0xff]
  %v94 = vld [vmem:[%s1 + $0x1e8] sm:$0xff]
  %v95 = vld [vmem:[%s1 + $0x1f0] sm:$0xff]
  %v96 = vld [vmem:[%s1 + $0x1f8] sm:$0xff]
  %v97 = vld [vmem:[%s1 + $0x200] sm:$0xff]
  %v98 = vld [vmem:[%s1 + $0x208] sm:$0xff]
  %v99 = vld [vmem:[%s1 + $0x210] sm:$0xff]
  %v100 = vld [vmem:[%s1 + $0x218] sm:$0xff]
  %v101 = vld [vmem:[%s1 + $0x220] sm:$0xff]
  %v102 = vld [vmem:[%s1 + $0x228] sm:$0xff]
  %v103 = vld [vmem:[%s1 + $0x230] sm:$0xff]
  %v104 = vld [vmem:[%s1 + $0x238] sm:$0xff]
  %v105 = vld [vmem:[%s1 + $0x240] sm:$0xff]
  %v106 = vld [vmem:[%s1 + $0x248] sm:$0xff]
  %v107 = vld [vmem:[%s1 + $0x250] sm:$0xff]
  %v108 = vld [vmem:[%s1 + $0x258] sm:$0xff]
  %v109 = vld [vmem:[%s1 + $0x260] sm:$0xff]
  %v110 = vld [vmem:[%s1 + $0x268] sm:$0xff]
  %v111 = vld [vmem:[%s1 + $0x270] sm:$0xff]
  %v112 = vld [vmem:[%s1 + $0x278] sm:$0xff]
  %v113 = vld [vmem:[%s1 + $0x280] sm:$0xff]
  %v114 = vld [vmem:[%s1 + $0x288] sm:$0xff]
  %v115 = vld [vmem:[%s1 + $0x290] sm:$0xff]
  %v116 = vld [vmem:[%s1 + $0x298] sm:$0xff]
  %v117 = vld [vmem:[%s1 + $0x2a0] sm:$0xff]
  %v118 = vld [vmem:[%s1 + $0x2a8] sm:$0xff]
  %v119 = vld [vmem:[%s1 + $0x2b0] sm:$0xff]
  %v120 = vld [vmem:[%s1 + $0x2b8] sm:$0xff]
  %v121 = vld [vmem:[%s1 + $0x2c0] sm:$0xff]
  %v122 = vld [vmem:[%s1 + $0x2c8] sm:$0xff]
  %v123 = vld [vmem:[%s1 + $0x2d0] sm:$0xff]
  %v124 = vld [vmem:[%s1 + $0x2d8] sm:$0xff]
  %v125 = vld [vmem:[%s1 + $0x2e0] sm:$0xff]
  %v126 = vld [vmem:[%s1 + $0x2e8] sm:$0xff]
  %v127 = vld [vmem:[%s1 + $0x2f0] sm:$0xff]
  %v128 = vld [vmem:[%s1 + $0x2f8] sm:$0xff]
  %v129 = vld [vmem:[%s1 + $0x300] sm:$0xff]
  %v130 = vld [vmem:[%s1 + $0x308] sm:$0xff]
  %v131 = vld [vmem:[%s1 + $0x310] sm:$0xff]
  %v132 = vld [vmem:[%s1 + $0x318] sm:$0xff]
  %v133 = vld [vmem:[%s1 + $0x320] sm:$0xff]
  %v134 = vld [vmem:[%s1 + $0x328] sm:$0xff]
  %v135 = vld [vmem:[%s1 + $0x330] sm:$0xff]
  %v136 = vld [vmem:[%s1 + $0x338] sm:$0xff]
  %v137 = vld [vmem:[%s1 + $0x340] sm:$0xff]
  %v138 = vld [vmem:[%s1 + $0x348] sm:$0xff]
  %v139 = vld [vmem:[%s1 + $0x350] sm:$0xff]
  %v140 = vld [vmem:[%s1 + $0x358] sm:$0xff]
  %v141 = vld [vmem:[%s1 + $0x360] sm:$0xff]
  %v142 = vld [vmem:[%s1 + $0x368] sm:$0xff]
  %v143 = vld [vmem:[%s1 + $0x370] sm:$0xff]
  %v144 = vld [vmem:[%s1 + $0x378] sm:$0xff]
  %v145 = vld [vmem:[%s1 + $0x380] sm:$0xff]
  %v146 = vld [vmem:[%s1 + $0x388] sm:$0xff]
  %v147 = vld [vmem:[%s1 + $0x390] sm:$0xff]
  %v148 = vld [vmem:[%s1 + $0x398] sm:$0xff]
  %v149 = vld [vmem:[%s1 + $0x3a0] sm:$0xff]
  %v150 = vld [vmem:[%s1 + $0x3a8] sm:$0xff]
  %v151 = vld [vmem:[%s1 + $0x3b0] sm:$0xff]
  %v152 = vld [vmem:[%s1 + $0x3b8] sm:$0xff]
  %v153 = vld [vmem:[%s1 + $0x3c0] sm:$0xff]
  %v154 = vld [vmem:[%s1 + $0x3c8] sm:$0xff]
  %v155 = vld [vmem:[%s1 + $0x3d0] sm:$0xff]
  %v156 = vld [vmem:[%s1 + $0x3d8] sm:$0xff]
  %v157 = vld [vmem:[%s1 + $0x3e0] sm:$0xff]
  %v158 = vld [vmem:[%s1 + $0x3e8] sm:$0xff]
  %v159 = vld [vmem:[%s1 + $0x3f0] sm:$0xff]
  %v160 = vld [vmem:[%s1 + $0x3f8] sm:$0xff]
  %v161 = vld [vmem:[%s1 + $0x400] sm:$0xff]
  %v162 = vld [vmem:[%s1 + $0x408] sm:$0xff]
  %v163 = vld [vmem:[%s1 + $0x410] sm:$0xff]
  %v164 = vld [vmem:[%s1 + $0x418] sm:$0xff]
  %v165 = vld [vmem:[%s1 + $0x420] sm:$0xff]
  %v166 = vld [vmem:[%s1 + $0x428] sm:$0xff]
  %v167 = vld [vmem:[%s1 + $0x430] sm:$0xff]
  %v168 = vld [vmem:[%s1 + $0x438] sm:$0xff]
  %v169 = vld [vmem:[%s1 + $0x440] sm:$0xff]
  %v170 = vld [vmem:[%s1 + $0x448] sm:$0xff]
  %v171 = vld [vmem:[%s1 + $0x450] sm:$0xff]
  %v172 = vld [vmem:[%s1 + $0x458] sm:$0xff]
  %v173 = vld [vmem:[%s1 + $0x460] sm:$0xff]
  %v174 = vld [vmem:[%s1 + $0x468] sm:$0xff]
  %v175 = vld [vmem:[%s1 + $0x470] sm:$0xff]
  %v176 = vld [vmem:[%s1 + $0x478] sm:$0xff]
  %v177 = vld [vmem:[%s1 + $0x480] sm:$0xff]
  %v178 = vld [vmem:[%s1 + $0x488] sm:$0xff]
  %v179 = vld [vmem:[%s1 + $0x490] sm:$0xff]
  %v180 = vld [vmem:[%s1 + $0x498] sm:$0xff]
  %v181 = vld [vmem:[%s1 + $0x4a0] sm:$0xff]
  %v182 = vld [vmem:[%s1 + $0x4a8] sm:$0xff]
  %v183 = vld [vmem:[%s1 + $0x4b0] sm:$0xff]
  %v184 = vld [vmem:[%s1 + $0x4b8] sm:$0xff]
  %v185 = vld [vmem:[%s1 + $0x4c0] sm:$0xff]
  %v186 = vld [vmem:[%s1 + $0x4c8] sm:$0xff]
  %v187 = vld [vmem:[%s1 + $0x4d0] sm:$0xff]
  %v188 = vld [vmem:[%s1 + $0x4d8] sm:$0xff]
  %v189 = vld [vmem:[%s1 + $0x4e0] sm:$0xff]
  %v190 = vld [vmem:[%s1 + $0x4e8] sm:$0xff]
  %v191 = vld [vmem:[%s1 + $0x4f0] sm:$0xff]
  %v192 = vld [vmem:[%s1 + $0x4f8] sm:$0xff]
  %v193 = vld [vmem:[%s1 + $0x500] sm:$0xff]
  %v194 = vld [vmem:[%s1 + $0x508] sm:$0xff]
  %v195 = vld [vmem:[%s1 + $0x510] sm:$0xff]
  %v196 = vld [vmem:[%s1 + $0x518] sm:$0xff]
  %v197 = vld [vmem:[%s1 + $0x520] sm:$0xff]
  %v198 = vld [vmem:[%s1 + $0x528] sm:$0xff]
  %v199 = vld [vmem:[%s1 + $0x530] sm:$0xff]
  %v200 = vld [vmem:[%s1 + $0x538] sm:$0xff]
  %v201 = vld [vmem:[%s1 + $0x540] sm:$0xff]
  %v202 = vld [vmem:[%s1 + $0x548] sm:$0xff]
  %v203 = vld [vmem:[%s1 + $0x550] sm:$0xff]
  %v204 = vld [vmem:[%s1 + $0x558] sm:$0xff]
  %v205 = vld [vmem:[%s1 + $0x560] sm:$0xff]
  %v206 = vld [vmem:[%s1 + $0x568] sm:$0xff]
  %v207 = vld [vmem:[%s1 + $0x570] sm:$0xff]
  %v208 = vld [vmem:[%s1 + $0x578] sm:$0xff]
  %v209 = vld [vmem:[%s1 + $0x580] sm:$0xff]
  %v210 = vld [vmem:[%s1 + $0x588] sm:$0xff]
  %v211 = vld [vmem:[%s1 + $0x590] sm:$0xff]
  %v212 = vld [vmem:[%s1 + $0x598] sm:$0xff]
  %v213 = vld [vmem:[%s1 + $0x5a0] sm:$0xff]
  %v214 = vld [vmem:[%s1 + $0x5a8] sm:$0xff]
  %v215 = vld [vmem:[%s1 + $0x5b0] sm:$0xff]
  %v216 = vld [vmem:[%s1 + $0x5b8] sm:$0xff]
  %v217 = vld [vmem:[%s1 + $0x5c0] sm:$0xff]
  %v218 = vld [vmem:[%s1 + $0x5c8] sm:$0xff]
  %v219 = vld [vmem:[%s1 + $0x5d0] sm:$0xff]
  %v220 = vld [vmem:[%s1 + $0x5d8] sm:$0xff]
  %v221 = vld [vmem:[%s1 + $0x5e0] sm:$0xff]
  %v222 = vld [vmem:[%s1 + $0x5e8] sm:$0xff]
  %v223 = vld [vmem:[%s1 + $0x5f0] sm:$0xff]
  %v224 = vld [vmem:[%s1 + $0x5f8] sm:$0xff]
  %v225 = vld [vmem:[%s1 + $0x600] sm:$0xff]
  %v226 = vld [vmem:[%s1 + $0x608] sm:$0xff]
  %v227 = vld [vmem:[%s1 + $0x610] sm:$0xff]
  %v228 = vld [vmem:[%s1 + $0x618] sm:$0xff]
  %v229 = vld [vmem:[%s1 + $0x620] sm:$0xff]
  %v230 = vld [vmem:[%s1 + $0x628] sm:$0xff]
  %v231 = vld [vmem:[%s1 + $0x630] sm:$0xff]
  %v232 = vld [vmem:[%s1 + $0x638] sm:$0xff]
  %v233 = vld [vmem:[%s1 + $0x640] sm:$0xff]
  %v234 = vld [vmem:[%s1 + $0x648] sm:$0xff]
  %v235 = vld [vmem:[%s1 + $0x650] sm:$0xff]
  %v236 = vld [vmem:[%s1 + $0x658] sm:$0xff]
  %v237 = vld [vmem:[%s1 + $0x660] sm:$0xff]
  %v238 = vld [vmem:[%s1 + $0x668] sm:$0xff]
  %v239 = vld [vmem:[%s1 + $0x670] sm:$0xff]
  %v240 = vld [vmem:[%s1 + $0x678] sm:$0xff]
  %v241 = vld [vmem:[%s1 + $0x680] sm:$0xff]
  %v242 = vld [vmem:[%s1 + $0x688] sm:$0xff]
  %v243 = vld [vmem:[%s1 + $0x690] sm:$0xff]
  %v244 = vld [vmem:[%s1 + $0x698] sm:$0xff]
  %v245 = vld [vmem:[%s1 + $0x6a0] sm:$0xff]
  %v246 = vld [vmem:[%s1 + $0x6a8] sm:$0xff]
  %v247 = vld [vmem:[%s1 + $0x6b0] sm:$0xff]
  %v248 = vld [vmem:[%s1 + $0x6b8] sm:$0xff]
  %v249 = vld [vmem:[%s1 + $0x6c0] sm:$0xff]
  %v250 = vld [vmem:[%s1 + $0x6c8] sm:$0xff]
  %v251 = vld [vmem:[%s1 + $0x6d0] sm:$0xff]
  %v252 = vld [vmem:[%s1 + $0x6d8] sm:$0xff]
  %v253 = vld [vmem:[%s1 + $0x6e0] sm:$0xff]
  %v254 = vld [vmem:[%s1 + $0x6e8] sm:$0xff]
  %v255 = vld [vmem:[%s1 + $0x6f0] sm:$0xff]
  %v256 = vld [vmem:[%s1 + $0x6f8] sm:$0xff]
  %v257 = vld [vmem:[%s1 + $0x700] sm:$0xff]
  %v258 = vld [vmem:[%s1 + $0x708] sm:$0xff]
  %v259 = vld [vmem:[%s1 + $0x710] sm:$0xff]
  %v260 = vld [vmem:[%s1 + $0x718] sm:$0xff]
  %v261 = vld [vmem:[%s1 + $0x720] sm:$0xff]
  %v262 = vld [vmem:[%s1 + $0x728] sm:$0xff]
  %v263 = vld [vmem:[%s1 + $0x730] sm:$0xff]
  %v264 = vld [vmem:[%s1 + $0x738] sm:$0xff]
  %v265 = vld [vmem:[%s1 + $0x740] sm:$0xff]
  %v266 = vld [vmem:[%s1 + $0x748] sm:$0xff]
  %v267 = vld [vmem:[%s1 + $0x750] sm:$0xff]
  %v268 = vld [vmem:[%s1 + $0x758] sm:$0xff]
  %v269 = vld [vmem:[%s1 + $0x760] sm:$0xff]
  %v270 = vld [vmem:[%s1 + $0x768] sm:$0xff]
  %v271 = vld [vmem:[%s1 + $0x770] sm:$0xff]
  %v272 = vld [vmem:[%s1 + $0x778] sm:$0xff]
  %v273 = vld [vmem:[%s1 + $0x780] sm:$0xff]
  %v274 = vld [vmem:[%s1 + $0x788] sm:$0xff]
  %v275 = vld [vmem:[%s1 + $0x790] sm:$0xff]
  %v276 = vld [vmem:[%s1 + $0x798] sm:$0xff]
  %v277 = vld [vmem:[%s1 + $0x7a0] sm:$0xff]
  %v278 = vld [vmem:[%s1 + $0x7a8] sm:$0xff]
  %v279 = vld [vmem:[%s1 + $0x7b0] sm:$0xff]
  %v280 = vld [vmem:[%s1 + $0x7b8] sm:$0xff]
  %v281 = vld [vmem:[%s1 + $0x7c0] sm:$0xff]
  %v282 = vld [vmem:[%s1 + $0x7c8] sm:$0xff]
  %v283 = vld [vmem:[%s1 + $0x7d0] sm:$0xff]
  %v284 = vld [vmem:[%s1 + $0x7d8] sm:$0xff]
  %v285 = vld [vmem:[%s1 + $0x7e0] sm:$0xff]
  %v286 = vld [vmem:[%s1 + $0x7e8] sm:$0xff]
  %v287 = vld [vmem:[%s1 + $0x7f0] sm:$0xff]
  %v288 = vld [vmem:[%s1 + $0x7f8] sm:$0xff]
  %v297 = vunpack.c.l.b16 %v25
  %v298 = vunpack.c.h.b16 %v25
  %v299 = vunpack.c.l.b16 %v26
  %v300 = vunpack.c.h.b16 %v26
  %v301 = vunpack.c.l.b16 %v27
  %v302 = vunpack.c.h.b16 %v27
  %v303 = vunpack.c.l.b16 %v28
  %v304 = vunpack.c.h.b16 %v28
  %v305 = vunpack.c.l.b16 %v29
  %v306 = vunpack.c.h.b16 %v29
  %v307 = vunpack.c.l.b16 %v30
  %v308 = vunpack.c.h.b16 %v30
  %v309 = vunpack.c.l.b16 %v31
  %v310 = vunpack.c.h.b16 %v31
  %v311 = vunpack.c.l.b16 %v32
  %v312 = vunpack.c.h.b16 %v32
  %v313 = vpack.c.b16 %v297, %v297
  %v314 = vpack.c.b16 %v298, %v298
  %v315 = vpack.c.b16 %v299, %v299
  %v316 = vpack.c.b16 %v300, %v300
  %v317 = vpack.c.b16 %v301, %v301
  %v318 = vpack.c.b16 %v302, %v302
  %v319 = vpack.c.b16 %v303, %v303
  %v320 = vpack.c.b16 %v304, %v304
  %v321 = vpack.c.b16 %v305, %v305
  %v322 = vpack.c.b16 %v306, %v306
  %v323 = vpack.c.b16 %v307, %v307
  %v324 = vpack.c.b16 %v308, %v308
  %v325 = vpack.c.b16 %v309, %v309
  %v326 = vpack.c.b16 %v310, %v310
  %v327 = vpack.c.b16 %v311, %v311
  %v328 = vpack.c.b16 %v312, %v312
  %v601 = vunpack.c.l.b16 %v33
  %v602 = vunpack.c.h.b16 %v33
  %v603 = vunpack.c.l.b16 %v34
  %v604 = vunpack.c.h.b16 %v34
  %v605 = vunpack.c.l.b16 %v35
  %v606 = vunpack.c.h.b16 %v35
  %v607 = vunpack.c.l.b16 %v36
  %v608 = vunpack.c.h.b16 %v36
  %v609 = vunpack.c.l.b16 %v37
  %v610 = vunpack.c.h.b16 %v37
  %v611 = vunpack.c.l.b16 %v38
  %v612 = vunpack.c.h.b16 %v38
  %v613 = vunpack.c.l.b16 %v39
  %v614 = vunpack.c.h.b16 %v39
  %v615 = vunpack.c.l.b16 %v40
  %v616 = vunpack.c.h.b16 %v40
  %v617 = vunpack.c.l.b16 %v41
  %v618 = vunpack.c.h.b16 %v41
  %v619 = vunpack.c.l.b16 %v42
  %v620 = vunpack.c.h.b16 %v42
  %v621 = vunpack.c.l.b16 %v43
  %v622 = vunpack.c.h.b16 %v43
  %v623 = vunpack.c.l.b16 %v44
  %v624 = vunpack.c.h.b16 %v44
  %v625 = vunpack.c.l.b16 %v45
  %v626 = vunpack.c.h.b16 %v45
  %v627 = vunpack.c.l.b16 %v46
  %v628 = vunpack.c.h.b16 %v46
  %v629 = vunpack.c.l.b16 %v47
  %v630 = vunpack.c.h.b16 %v47
  %v631 = vunpack.c.l.b16 %v48
  %v632 = vunpack.c.h.b16 %v48
  %v633 = vunpack.c.l.b16 %v49
  %v634 = vunpack.c.h.b16 %v49
  %v635 = vunpack.c.l.b16 %v50
  %v636 = vunpack.c.h.b16 %v50
  %v637 = vunpack.c.l.b16 %v51
  %v638 = vunpack.c.h.b16 %v51
  %v639 = vunpack.c.l.b16 %v52
  %v640 = vunpack.c.h.b16 %v52
  %v641 = vunpack.c.l.b16 %v53
  %v642 = vunpack.c.h.b16 %v53
  %v643 = vunpack.c.l.b16 %v54
  %v644 = vunpack.c.h.b16 %v54
  %v645 = vunpack.c.l.b16 %v55
  %v646 = vunpack.c.h.b16 %v55
  %v647 = vunpack.c.l.b16 %v56
  %v648 = vunpack.c.h.b16 %v56
  %v649 = vunpack.c.l.b16 %v57
  %v650 = vunpack.c.h.b16 %v57
  %v651 = vunpack.c.l.b16 %v58
  %v652 = vunpack.c.h.b16 %v58
  %v653 = vunpack.c.l.b16 %v59
  %v654 = vunpack.c.h.b16 %v59
  %v655 = vunpack.c.l.b16 %v60
  %v656 = vunpack.c.h.b16 %v60
  %v657 = vunpack.c.l.b16 %v61
  %v658 = vunpack.c.h.b16 %v61
  %v659 = vunpack.c.l.b16 %v62
  %v660 = vunpack.c.h.b16 %v62
  %v661 = vunpack.c.l.b16 %v63
  %v662 = vunpack.c.h.b16 %v63
  %v663 = vunpack.c.l.b16 %v64
  %v664 = vunpack.c.h.b16 %v64
  %v665 = vunpack.c.l.b16 %v65
  %v666 = vunpack.c.h.b16 %v65
  %v667 = vunpack.c.l.b16 %v66
  %v668 = vunpack.c.h.b16 %v66
  %v669 = vunpack.c.l.b16 %v67
  %v670 = vunpack.c.h.b16 %v67
  %v671 = vunpack.c.l.b16 %v68
  %v672 = vunpack.c.h.b16 %v68
  %v673 = vunpack.c.l.b16 %v69
  %v674 = vunpack.c.h.b16 %v69
  %v675 = vunpack.c.l.b16 %v70
  %v676 = vunpack.c.h.b16 %v70
  %v677 = vunpack.c.l.b16 %v71
  %v678 = vunpack.c.h.b16 %v71
  %v679 = vunpack.c.l.b16 %v72
  %v680 = vunpack.c.h.b16 %v72
  %v681 = vunpack.c.l.b16 %v73
  %v682 = vunpack.c.h.b16 %v73
  %v683 = vunpack.c.l.b16 %v74
  %v684 = vunpack.c.h.b16 %v74
  %v685 = vunpack.c.l.b16 %v75
  %v686 = vunpack.c.h.b16 %v75
  %v687 = vunpack.c.l.b16 %v76
  %v688 = vunpack.c.h.b16 %v76
  %v689 = vunpack.c.l.b16 %v77
  %v690 = vunpack.c.h.b16 %v77
  %v691 = vunpack.c.l.b16 %v78
  %v692 = vunpack.c.h.b16 %v78
  %v693 = vunpack.c.l.b16 %v79
  %v694 = vunpack.c.h.b16 %v79
  %v695 = vunpack.c.l.b16 %v80
  %v696 = vunpack.c.h.b16 %v80
  %v697 = vunpack.c.l.b16 %v81
  %v698 = vunpack.c.h.b16 %v81
  %v699 = vunpack.c.l.b16 %v82
  %v700 = vunpack.c.h.b16 %v82
  %v701 = vunpack.c.l.b16 %v83
  %v702 = vunpack.c.h.b16 %v83
  %v703 = vunpack.c.l.b16 %v84
  %v704 = vunpack.c.h.b16 %v84
  %v705 = vunpack.c.l.b16 %v85
  %v706 = vunpack.c.h.b16 %v85
  %v707 = vunpack.c.l.b16 %v86
  %v708 = vunpack.c.h.b16 %v86
  %v709 = vunpack.c.l.b16 %v87
  %v710 = vunpack.c.h.b16 %v87
  %v711 = vunpack.c.l.b16 %v88
  %v712 = vunpack.c.h.b16 %v88
  %v713 = vunpack.c.l.b16 %v89
  %v714 = vunpack.c.h.b16 %v89
  %v715 = vunpack.c.l.b16 %v90
  %v716 = vunpack.c.h.b16 %v90
  %v717 = vunpack.c.l.b16 %v91
  %v718 = vunpack.c.h.b16 %v91
  %v719 = vunpack.c.l.b16 %v92
  %v720 = vunpack.c.h.b16 %v92
  %v721 = vunpack.c.l.b16 %v93
  %v722 = vunpack.c.h.b16 %v93
  %v723 = vunpack.c.l.b16 %v94
  %v724 = vunpack.c.h.b16 %v94
  %v725 = vunpack.c.l.b16 %v95
  %v726 = vunpack.c.h.b16 %v95
  %v727 = vunpack.c.l.b16 %v96
  %v728 = vunpack.c.h.b16 %v96
  %v729 = vunpack.c.l.b16 %v97
  %v730 = vunpack.c.h.b16 %v97
  %v731 = vunpack.c.l.b16 %v98
  %v732 = vunpack.c.h.b16 %v98
  %v733 = vunpack.c.l.b16 %v99
  %v734 = vunpack.c.h.b16 %v99
  %v735 = vunpack.c.l.b16 %v100
  %v736 = vunpack.c.h.b16 %v100
  %v737 = vunpack.c.l.b16 %v101
  %v738 = vunpack.c.h.b16 %v101
  %v739 = vunpack.c.l.b16 %v102
  %v740 = vunpack.c.h.b16 %v102
  %v741 = vunpack.c.l.b16 %v103
  %v742 = vunpack.c.h.b16 %v103
  %v743 = vunpack.c.l.b16 %v104
  %v744 = vunpack.c.h.b16 %v104
  %v745 = vunpack.c.l.b16 %v105
  %v746 = vunpack.c.h.b16 %v105
  %v747 = vunpack.c.l.b16 %v106
  %v748 = vunpack.c.h.b16 %v106
  %v749 = vunpack.c.l.b16 %v107
  %v750 = vunpack.c.h.b16 %v107
  %v751 = vunpack.c.l.b16 %v108
  %v752 = vunpack.c.h.b16 %v108
  %v753 = vunpack.c.l.b16 %v109
  %v754 = vunpack.c.h.b16 %v109
  %v755 = vunpack.c.l.b16 %v110
  %v756 = vunpack.c.h.b16 %v110
  %v757 = vunpack.c.l.b16 %v111
  %v758 = vunpack.c.h.b16 %v111
  %v759 = vunpack.c.l.b16 %v112
  %v760 = vunpack.c.h.b16 %v112
  %v761 = vunpack.c.l.b16 %v113
  %v762 = vunpack.c.h.b16 %v113
  %v763 = vunpack.c.l.b16 %v114
  %v764 = vunpack.c.h.b16 %v114
  %v765 = vunpack.c.l.b16 %v115
  %v766 = vunpack.c.h.b16 %v115
  %v767 = vunpack.c.l.b16 %v116
  %v768 = vunpack.c.h.b16 %v116
  %v769 = vunpack.c.l.b16 %v117
  %v770 = vunpack.c.h.b16 %v117
  %v771 = vunpack.c.l.b16 %v118
  %v772 = vunpack.c.h.b16 %v118
  %v773 = vunpack.c.l.b16 %v119
  %v774 = vunpack.c.h.b16 %v119
  %v775 = vunpack.c.l.b16 %v120
  %v776 = vunpack.c.h.b16 %v120
  %v777 = vunpack.c.l.b16 %v121
  %v778 = vunpack.c.h.b16 %v121
  %v779 = vunpack.c.l.b16 %v122
  %v780 = vunpack.c.h.b16 %v122
  %v781 = vunpack.c.l.b16 %v123
  %v782 = vunpack.c.h.b16 %v123
  %v783 = vunpack.c.l.b16 %v124
  %v784 = vunpack.c.h.b16 %v124
  %v785 = vunpack.c.l.b16 %v125
  %v786 = vunpack.c.h.b16 %v125
  %v787 = vunpack.c.l.b16 %v126
  %v788 = vunpack.c.h.b16 %v126
  %v789 = vunpack.c.l.b16 %v127
  %v790 = vunpack.c.h.b16 %v127
  %v791 = vunpack.c.l.b16 %v128
  %v792 = vunpack.c.h.b16 %v128
  %v793 = vunpack.c.l.b16 %v129
  %v794 = vunpack.c.h.b16 %v129
  %v795 = vunpack.c.l.b16 %v130
  %v796 = vunpack.c.h.b16 %v130
  %v797 = vunpack.c.l.b16 %v131
  %v798 = vunpack.c.h.b16 %v131
  %v799 = vunpack.c.l.b16 %v132
  %v800 = vunpack.c.h.b16 %v132
  %v801 = vunpack.c.l.b16 %v133
  %v802 = vunpack.c.h.b16 %v133
  %v803 = vunpack.c.l.b16 %v134
  %v804 = vunpack.c.h.b16 %v134
  %v805 = vunpack.c.l.b16 %v135
  %v806 = vunpack.c.h.b16 %v135
  %v807 = vunpack.c.l.b16 %v136
  %v808 = vunpack.c.h.b16 %v136
  %v809 = vunpack.c.l.b16 %v137
  %v810 = vunpack.c.h.b16 %v137
  %v811 = vunpack.c.l.b16 %v138
  %v812 = vunpack.c.h.b16 %v138
  %v813 = vunpack.c.l.b16 %v139
  %v814 = vunpack.c.h.b16 %v139
  %v815 = vunpack.c.l.b16 %v140
  %v816 = vunpack.c.h.b16 %v140
  %v817 = vunpack.c.l.b16 %v141
  %v818 = vunpack.c.h.b16 %v141
  %v819 = vunpack.c.l.b16 %v142
  %v820 = vunpack.c.h.b16 %v142
  %v821 = vunpack.c.l.b16 %v143
  %v822 = vunpack.c.h.b16 %v143
  %v823 = vunpack.c.l.b16 %v144
  %v824 = vunpack.c.h.b16 %v144
  %v825 = vunpack.c.l.b16 %v145
  %v826 = vunpack.c.h.b16 %v145
  %v827 = vunpack.c.l.b16 %v146
  %v828 = vunpack.c.h.b16 %v146
  %v829 = vunpack.c.l.b16 %v147
  %v830 = vunpack.c.h.b16 %v147
  %v831 = vunpack.c.l.b16 %v148
  %v832 = vunpack.c.h.b16 %v148
  %v833 = vunpack.c.l.b16 %v149
  %v834 = vunpack.c.h.b16 %v149
  %v835 = vunpack.c.l.b16 %v150
  %v836 = vunpack.c.h.b16 %v150
  %v837 = vunpack.c.l.b16 %v151
  %v838 = vunpack.c.h.b16 %v151
  %v839 = vunpack.c.l.b16 %v152
  %v840 = vunpack.c.h.b16 %v152
  %v841 = vunpack.c.l.b16 %v153
  %v842 = vunpack.c.h.b16 %v153
  %v843 = vunpack.c.l.b16 %v154
  %v844 = vunpack.c.h.b16 %v154
  %v845 = vunpack.c.l.b16 %v155
  %v846 = vunpack.c.h.b16 %v155
  %v847 = vunpack.c.l.b16 %v156
  %v848 = vunpack.c.h.b16 %v156
  %v849 = vunpack.c.l.b16 %v157
  %v850 = vunpack.c.h.b16 %v157
  %v851 = vunpack.c.l.b16 %v158
  %v852 = vunpack.c.h.b16 %v158
  %v853 = vunpack.c.l.b16 %v159
  %v854 = vunpack.c.h.b16 %v159
  %v855 = vunpack.c.l.b16 %v160
  %v856 = vunpack.c.h.b16 %v160
  %v857 = vunpack.c.l.b16 %v161
  %v858 = vunpack.c.h.b16 %v161
  %v859 = vunpack.c.l.b16 %v162
  %v860 = vunpack.c.h.b16 %v162
  %v861 = vunpack.c.l.b16 %v163
  %v862 = vunpack.c.h.b16 %v163
  %v863 = vunpack.c.l.b16 %v164
  %v864 = vunpack.c.h.b16 %v164
  %v865 = vunpack.c.l.b16 %v165
  %v866 = vunpack.c.h.b16 %v165
  %v867 = vunpack.c.l.b16 %v166
  %v868 = vunpack.c.h.b16 %v166
  %v869 = vunpack.c.l.b16 %v167
  %v870 = vunpack.c.h.b16 %v167
  %v871 = vunpack.c.l.b16 %v168
  %v872 = vunpack.c.h.b16 %v168
  %v873 = vunpack.c.l.b16 %v169
  %v874 = vunpack.c.h.b16 %v169
  %v875 = vunpack.c.l.b16 %v170
  %v876 = vunpack.c.h.b16 %v170
  %v877 = vunpack.c.l.b16 %v171
  %v878 = vunpack.c.h.b16 %v171
  %v879 = vunpack.c.l.b16 %v172
  %v880 = vunpack.c.h.b16 %v172
  %v881 = vunpack.c.l.b16 %v173
  %v882 = vunpack.c.h.b16 %v173
  %v883 = vunpack.c.l.b16 %v174
  %v884 = vunpack.c.h.b16 %v174
  %v885 = vunpack.c.l.b16 %v175
  %v886 = vunpack.c.h.b16 %v175
  %v887 = vunpack.c.l.b16 %v176
  %v888 = vunpack.c.h.b16 %v176
  %v889 = vunpack.c.l.b16 %v177
  %v890 = vunpack.c.h.b16 %v177
  %v891 = vunpack.c.l.b16 %v178
  %v892 = vunpack.c.h.b16 %v178
  %v893 = vunpack.c.l.b16 %v179
  %v894 = vunpack.c.h.b16 %v179
  %v895 = vunpack.c.l.b16 %v180
  %v896 = vunpack.c.h.b16 %v180
  %v897 = vunpack.c.l.b16 %v181
  %v898 = vunpack.c.h.b16 %v181
  %v899 = vunpack.c.l.b16 %v182
  %v900 = vunpack.c.h.b16 %v182
  %v901 = vunpack.c.l.b16 %v183
  %v902 = vunpack.c.h.b16 %v183
  %v903 = vunpack.c.l.b16 %v184
  %v904 = vunpack.c.h.b16 %v184
  %v905 = vunpack.c.l.b16 %v185
  %v906 = vunpack.c.h.b16 %v185
  %v907 = vunpack.c.l.b16 %v186
  %v908 = vunpack.c.h.b16 %v186
  %v909 = vunpack.c.l.b16 %v187
  %v910 = vunpack.c.h.b16 %v187
  %v911 = vunpack.c.l.b16 %v188
  %v912 = vunpack.c.h.b16 %v188
  %v913 = vunpack.c.l.b16 %v189
  %v914 = vunpack.c.h.b16 %v189
  %v915 = vunpack.c.l.b16 %v190
  %v916 = vunpack.c.h.b16 %v190
  %v917 = vunpack.c.l.b16 %v191
  %v918 = vunpack.c.h.b16 %v191
  %v919 = vunpack.c.l.b16 %v192
  %v920 = vunpack.c.h.b16 %v192
  %v921 = vunpack.c.l.b16 %v193
  %v922 = vunpack.c.h.b16 %v193
  %v923 = vunpack.c.l.b16 %v194
  %v924 = vunpack.c.h.b16 %v194
  %v925 = vunpack.c.l.b16 %v195
  %v926 = vunpack.c.h.b16 %v195
  %v927 = vunpack.c.l.b16 %v196
  %v928 = vunpack.c.h.b16 %v196
  %v929 = vunpack.c.l.b16 %v197
  %v930 = vunpack.c.h.b16 %v197
  %v931 = vunpack.c.l.b16 %v198
  %v932 = vunpack.c.h.b16 %v198
  %v933 = vunpack.c.l.b16 %v199
  %v934 = vunpack.c.h.b16 %v199
  %v935 = vunpack.c.l.b16 %v200
  %v936 = vunpack.c.h.b16 %v200
  %v937 = vunpack.c.l.b16 %v201
  %v938 = vunpack.c.h.b16 %v201
  %v939 = vunpack.c.l.b16 %v202
  %v940 = vunpack.c.h.b16 %v202
  %v941 = vunpack.c.l.b16 %v203
  %v942 = vunpack.c.h.b16 %v203
  %v943 = vunpack.c.l.b16 %v204
  %v944 = vunpack.c.h.b16 %v204
  %v945 = vunpack.c.l.b16 %v205
  %v946 = vunpack.c.h.b16 %v205
  %v947 = vunpack.c.l.b16 %v206
  %v948 = vunpack.c.h.b16 %v206
  %v949 = vunpack.c.l.b16 %v207
  %v950 = vunpack.c.h.b16 %v207
  %v951 = vunpack.c.l.b16 %v208
  %v952 = vunpack.c.h.b16 %v208
  %v953 = vunpack.c.l.b16 %v209
  %v954 = vunpack.c.h.b16 %v209
  %v955 = vunpack.c.l.b16 %v210
  %v956 = vunpack.c.h.b16 %v210
  %v957 = vunpack.c.l.b16 %v211
  %v958 = vunpack.c.h.b16 %v211
  %v959 = vunpack.c.l.b16 %v212
  %v960 = vunpack.c.h.b16 %v212
  %v961 = vunpack.c.l.b16 %v213
  %v962 = vunpack.c.h.b16 %v213
  %v963 = vunpack.c.l.b16 %v214
  %v964 = vunpack.c.h.b16 %v214
  %v965 = vunpack.c.l.b16 %v215
  %v966 = vunpack.c.h.b16 %v215
  %v967 = vunpack.c.l.b16 %v216
  %v968 = vunpack.c.h.b16 %v216
  %v969 = vunpack.c.l.b16 %v217
  %v970 = vunpack.c.h.b16 %v217
  %v971 = vunpack.c.l.b16 %v218
  %v972 = vunpack.c.h.b16 %v218
  %v973 = vunpack.c.l.b16 %v219
  %v974 = vunpack.c.h.b16 %v219
  %v975 = vunpack.c.l.b16 %v220
  %v976 = vunpack.c.h.b16 %v220
  %v977 = vunpack.c.l.b16 %v221
  %v978 = vunpack.c.h.b16 %v221
  %v979 = vunpack.c.l.b16 %v222
  %v980 = vunpack.c.h.b16 %v222
  %v981 = vunpack.c.l.b16 %v223
  %v982 = vunpack.c.h.b16 %v223
  %v983 = vunpack.c.l.b16 %v224
  %v984 = vunpack.c.h.b16 %v224
  %v985 = vunpack.c.l.b16 %v225
  %v986 = vunpack.c.h.b16 %v225
  %v987 = vunpack.c.l.b16 %v226
  %v988 = vunpack.c.h.b16 %v226
  %v989 = vunpack.c.l.b16 %v227
  %v990 = vunpack.c.h.b16 %v227
  %v991 = vunpack.c.l.b16 %v228
  %v992 = vunpack.c.h.b16 %v228
  %v993 = vunpack.c.l.b16 %v229
  %v994 = vunpack.c.h.b16 %v229
  %v995 = vunpack.c.l.b16 %v230
  %v996 = vunpack.c.h.b16 %v230
  %v997 = vunpack.c.l.b16 %v231
  %v998 = vunpack.c.h.b16 %v231
  %v999 = vunpack.c.l.b16 %v232
  %v1000 = vunpack.c.h.b16 %v232
  %v1001 = vunpack.c.l.b16 %v233
  %v1002 = vunpack.c.h.b16 %v233
  %v1003 = vunpack.c.l.b16 %v234
  %v1004 = vunpack.c.h.b16 %v234
  %v1005 = vunpack.c.l.b16 %v235
  %v1006 = vunpack.c.h.b16 %v235
  %v1007 = vunpack.c.l.b16 %v236
  %v1008 = vunpack.c.h.b16 %v236
  %v1009 = vunpack.c.l.b16 %v237
  %v1010 = vunpack.c.h.b16 %v237
  %v1011 = vunpack.c.l.b16 %v238
  %v1012 = vunpack.c.h.b16 %v238
  %v1013 = vunpack.c.l.b16 %v239
  %v1014 = vunpack.c.h.b16 %v239
  %v1015 = vunpack.c.l.b16 %v240
  %v1016 = vunpack.c.h.b16 %v240
  %v1017 = vunpack.c.l.b16 %v241
  %v1018 = vunpack.c.h.b16 %v241
  %v1019 = vunpack.c.l.b16 %v242
  %v1020 = vunpack.c.h.b16 %v242
  %v1021 = vunpack.c.l.b16 %v243
  %v1022 = vunpack.c.h.b16 %v243
  %v1023 = vunpack.c.l.b16 %v244
  %v1024 = vunpack.c.h.b16 %v244
  %v1025 = vunpack.c.l.b16 %v245
  %v1026 = vunpack.c.h.b16 %v245
  %v1027 = vunpack.c.l.b16 %v246
  %v1028 = vunpack.c.h.b16 %v246
  %v1029 = vunpack.c.l.b16 %v247
  %v1030 = vunpack.c.h.b16 %v247
  %v1031 = vunpack.c.l.b16 %v248
  %v1032 = vunpack.c.h.b16 %v248
  %v1033 = vunpack.c.l.b16 %v249
  %v1034 = vunpack.c.h.b16 %v249
  %v1035 = vunpack.c.l.b16 %v250
  %v1036 = vunpack.c.h.b16 %v250
  %v1037 = vunpack.c.l.b16 %v251
  %v1038 = vunpack.c.h.b16 %v251
  %v1039 = vunpack.c.l.b16 %v252
  %v1040 = vunpack.c.h.b16 %v252
  %v1041 = vunpack.c.l.b16 %v253
  %v1042 = vunpack.c.h.b16 %v253
  %v1043 = vunpack.c.l.b16 %v254
  %v1044 = vunpack.c.h.b16 %v254
  %v1045 = vunpack.c.l.b16 %v255
  %v1046 = vunpack.c.h.b16 %v255
  %v1047 = vunpack.c.l.b16 %v256
  %v1048 = vunpack.c.h.b16 %v256
  %v1049 = vunpack.c.l.b16 %v257
  %v1050 = vunpack.c.h.b16 %v257
  %v1051 = vunpack.c.l.b16 %v258
  %v1052 = vunpack.c.h.b16 %v258
  %v1053 = vunpack.c.l.b16 %v259
  %v1054 = vunpack.c.h.b16 %v259
  %v1055 = vunpack.c.l.b16 %v260
  %v1056 = vunpack.c.h.b16 %v260
  %v1057 = vunpack.c.l.b16 %v261
  %v1058 = vunpack.c.h.b16 %v261
  %v1059 = vunpack.c.l.b16 %v262
  %v1060 = vunpack.c.h.b16 %v262
  %v1061 = vunpack.c.l.b16 %v263
  %v1062 = vunpack.c.h.b16 %v263
  %v1063 = vunpack.c.l.b16 %v264
  %v1064 = vunpack.c.h.b16 %v264
  %v1065 = vunpack.c.l.b16 %v265
  %v1066 = vunpack.c.h.b16 %v265
  %v1067 = vunpack.c.l.b16 %v266
  %v1068 = vunpack.c.h.b16 %v266
  %v1069 = vunpack.c.l.b16 %v267
  %v1070 = vunpack.c.h.b16 %v267
  %v1071 = vunpack.c.l.b16 %v268
  %v1072 = vunpack.c.h.b16 %v268
  %v1073 = vunpack.c.l.b16 %v269
  %v1074 = vunpack.c.h.b16 %v269
  %v1075 = vunpack.c.l.b16 %v270
  %v1076 = vunpack.c.h.b16 %v270
  %v1077 = vunpack.c.l.b16 %v271
  %v1078 = vunpack.c.h.b16 %v271
  %v1079 = vunpack.c.l.b16 %v272
  %v1080 = vunpack.c.h.b16 %v272
  %v1081 = vunpack.c.l.b16 %v273
  %v1082 = vunpack.c.h.b16 %v273
  %v1083 = vunpack.c.l.b16 %v274
  %v1084 = vunpack.c.h.b16 %v274
  %v1085 = vunpack.c.l.b16 %v275
  %v1086 = vunpack.c.h.b16 %v275
  %v1087 = vunpack.c.l.b16 %v276
  %v1088 = vunpack.c.h.b16 %v276
  %v1089 = vunpack.c.l.b16 %v277
  %v1090 = vunpack.c.h.b16 %v277
  %v1091 = vunpack.c.l.b16 %v278
  %v1092 = vunpack.c.h.b16 %v278
  %v1093 = vunpack.c.l.b16 %v279
  %v1094 = vunpack.c.h.b16 %v279
  %v1095 = vunpack.c.l.b16 %v280
  %v1096 = vunpack.c.h.b16 %v280
  %v1097 = vunpack.c.l.b16 %v281
  %v1098 = vunpack.c.h.b16 %v281
  %v1099 = vunpack.c.l.b16 %v282
  %v1100 = vunpack.c.h.b16 %v282
  %v1101 = vunpack.c.l.b16 %v283
  %v1102 = vunpack.c.h.b16 %v283
  %v1103 = vunpack.c.l.b16 %v284
  %v1104 = vunpack.c.h.b16 %v284
  %v1105 = vunpack.c.l.b16 %v285
  %v1106 = vunpack.c.h.b16 %v285
  %v1107 = vunpack.c.l.b16 %v286
  %v1108 = vunpack.c.h.b16 %v286
  %v1109 = vunpack.c.l.b16 %v287
  %v1110 = vunpack.c.h.b16 %v287
  %v1111 = vunpack.c.l.b16 %v288
  %v1112 = vunpack.c.h.b16 %v288
  %v1113 = vpack.c.b16 %v603, %v601
  %v1114 = vpack.c.b16 %v604, %v602
  %v1115 = vpack.c.b16 %v607, %v605
  %v1116 = vpack.c.b16 %v608, %v606
  %v1117 = vpack.c.b16 %v611, %v609
  %v1118 = vpack.c.b16 %v612, %v610
  %v1119 = vpack.c.b16 %v615, %v613
  %v1120 = vpack.c.b16 %v616, %v614
  %v1121 = vpack.c.b16 %v619, %v617
  %v1122 = vpack.c.b16 %v620, %v618
  %v1123 = vpack.c.b16 %v623, %v621
  %v1124 = vpack.c.b16 %v624, %v622
  %v1125 = vpack.c.b16 %v627, %v625
  %v1126 = vpack.c.b16 %v628, %v626
  %v1127 = vpack.c.b16 %v631, %v629
  %v1128 = vpack.c.b16 %v632, %v630
  %v1129 = vpack.c.b16 %v635, %v633
  %v1130 = vpack.c.b16 %v636, %v634
  %v1131 = vpack.c.b16 %v639, %v637
  %v1132 = vpack.c.b16 %v640, %v638
  %v1133 = vpack.c.b16 %v643, %v641
  %v1134 = vpack.c.b16 %v644, %v642
  %v1135 = vpack.c.b16 %v647, %v645
  %v1136 = vpack.c.b16 %v648, %v646
  %v1137 = vpack.c.b16 %v651, %v649
  %v1138 = vpack.c.b16 %v652, %v650
  %v1139 = vpack.c.b16 %v655, %v653
  %v1140 = vpack.c.b16 %v656, %v654
  %v1141 = vpack.c.b16 %v659, %v657
  %v1142 = vpack.c.b16 %v660, %v658
  %v1143 = vpack.c.b16 %v663, %v661
  %v1144 = vpack.c.b16 %v664, %v662
  %v1145 = vpack.c.b16 %v667, %v665
  %v1146 = vpack.c.b16 %v668, %v666
  %v1147 = vpack.c.b16 %v671, %v669
  %v1148 = vpack.c.b16 %v672, %v670
  %v1149 = vpack.c.b16 %v675, %v673
  %v1150 = vpack.c.b16 %v676, %v674
  %v1151 = vpack.c.b16 %v679, %v677
  %v1152 = vpack.c.b16 %v680, %v678
  %v1153 = vpack.c.b16 %v683, %v681
  %v1154 = vpack.c.b16 %v684, %v682
  %v1155 = vpack.c.b16 %v687, %v685
  %v1156 = vpack.c.b16 %v688, %v686
  %v1157 = vpack.c.b16 %v691, %v689
  %v1158 = vpack.c.b16 %v692, %v690
  %v1159 = vpack.c.b16 %v695, %v693
  %v1160 = vpack.c.b16 %v696, %v694
  %v1161 = vpack.c.b16 %v699, %v697
  %v1162 = vpack.c.b16 %v700, %v698
  %v1163 = vpack.c.b16 %v703, %v701
  %v1164 = vpack.c.b16 %v704, %v702
  %v1165 = vpack.c.b16 %v707, %v705
  %v1166 = vpack.c.b16 %v708, %v706
  %v1167 = vpack.c.b16 %v711, %v709
  %v1168 = vpack.c.b16 %v712, %v710
  %v1169 = vpack.c.b16 %v715, %v713
  %v1170 = vpack.c.b16 %v716, %v714
  %v1171 = vpack.c.b16 %v719, %v717
  %v1172 = vpack.c.b16 %v720, %v718
  %v1173 = vpack.c.b16 %v723, %v721
  %v1174 = vpack.c.b16 %v724, %v722
  %v1175 = vpack.c.b16 %v727, %v725
  %v1176 = vpack.c.b16 %v728, %v726
  %v1177 = vpack.c.b16 %v731, %v729
  %v1178 = vpack.c.b16 %v732, %v730
  %v1179 = vpack.c.b16 %v735, %v733
  %v1180 = vpack.c.b16 %v736, %v734
  %v1181 = vpack.c.b16 %v739, %v737
  %v1182 = vpack.c.b16 %v740, %v738
  %v1183 = vpack.c.b16 %v743, %v741
  %v1184 = vpack.c.b16 %v744, %v742
  %v1185 = vpack.c.b16 %v747, %v745
  %v1186 = vpack.c.b16 %v748, %v746
  %v1187 = vpack.c.b16 %v751, %v749
  %v1188 = vpack.c.b16 %v752, %v750
  %v1189 = vpack.c.b16 %v755, %v753
  %v1190 = vpack.c.b16 %v756, %v754
  %v1191 = vpack.c.b16 %v759, %v757
  %v1192 = vpack.c.b16 %v760, %v758
  %v1193 = vpack.c.b16 %v763, %v761
  %v1194 = vpack.c.b16 %v764, %v762
  %v1195 = vpack.c.b16 %v767, %v765
  %v1196 = vpack.c.b16 %v768, %v766
  %v1197 = vpack.c.b16 %v771, %v769
  %v1198 = vpack.c.b16 %v772, %v770
  %v1199 = vpack.c.b16 %v775, %v773
  %v1200 = vpack.c.b16 %v776, %v774
  %v1201 = vpack.c.b16 %v779, %v777
  %v1202 = vpack.c.b16 %v780, %v778
  %v1203 = vpack.c.b16 %v783, %v781
  %v1204 = vpack.c.b16 %v784, %v782
  %v1205 = vpack.c.b16 %v787, %v785
  %v1206 = vpack.c.b16 %v788, %v786
  %v1207 = vpack.c.b16 %v791, %v789
  %v1208 = vpack.c.b16 %v792, %v790
  %v1209 = vpack.c.b16 %v795, %v793
  %v1210 = vpack.c.b16 %v796, %v794
  %v1211 = vpack.c.b16 %v799, %v797
  %v1212 = vpack.c.b16 %v800, %v798
  %v1213 = vpack.c.b16 %v803, %v801
  %v1214 = vpack.c.b16 %v804, %v802
  %v1215 = vpack.c.b16 %v807, %v805
  %v1216 = vpack.c.b16 %v808, %v806
  %v1217 = vpack.c.b16 %v811, %v809
  %v1218 = vpack.c.b16 %v812, %v810
  %v1219 = vpack.c.b16 %v815, %v813
  %v1220 = vpack.c.b16 %v816, %v814
  %v1221 = vpack.c.b16 %v819, %v817
  %v1222 = vpack.c.b16 %v820, %v818
  %v1223 = vpack.c.b16 %v823, %v821
  %v1224 = vpack.c.b16 %v824, %v822
  %v1225 = vpack.c.b16 %v827, %v825
  %v1226 = vpack.c.b16 %v828, %v826
  %v1227 = vpack.c.b16 %v831, %v829
  %v1228 = vpack.c.b16 %v832, %v830
  %v1229 = vpack.c.b16 %v835, %v833
  %v1230 = vpack.c.b16 %v836, %v834
  %v1231 = vpack.c.b16 %v839, %v837
  %v1232 = vpack.c.b16 %v840, %v838
  %v1233 = vpack.c.b16 %v843, %v841
  %v1234 = vpack.c.b16 %v844, %v842
  %v1235 = vpack.c.b16 %v847, %v845
  %v1236 = vpack.c.b16 %v848, %v846
  %v1237 = vpack.c.b16 %v851, %v849
  %v1238 = vpack.c.b16 %v852, %v850
  %v1239 = vpack.c.b16 %v855, %v853
  %v1240 = vpack.c.b16 %v856, %v854
  %v1241 = vpack.c.b16 %v859, %v857
  %v1242 = vpack.c.b16 %v860, %v858
  %v1243 = vpack.c.b16 %v863, %v861
  %v1244 = vpack.c.b16 %v864, %v862
  %v1245 = vpack.c.b16 %v867, %v865
  %v1246 = vpack.c.b16 %v868, %v866
  %v1247 = vpack.c.b16 %v871, %v869
  %v1248 = vpack.c.b16 %v872, %v870
  %v1249 = vpack.c.b16 %v875, %v873
  %v1250 = vpack.c.b16 %v876, %v874
  %v1251 = vpack.c.b16 %v879, %v877
  %v1252 = vpack.c.b16 %v880, %v878
  %v1253 = vpack.c.b16 %v883, %v881
  %v1254 = vpack.c.b16 %v884, %v882
  %v1255 = vpack.c.b16 %v887, %v885
  %v1256 = vpack.c.b16 %v888, %v886
  %v1257 = vpack.c.b16 %v891, %v889
  %v1258 = vpack.c.b16 %v892, %v890
  %v1259 = vpack.c.b16 %v895, %v893
  %v1260 = vpack.c.b16 %v896, %v894
  %v1261 = vpack.c.b16 %v899, %v897
  %v1262 = vpack.c.b16 %v900, %v898
  %v1263 = vpack.c.b16 %v903, %v901
  %v1264 = vpack.c.b16 %v904, %v902
  %v1265 = vpack.c.b16 %v907, %v905
  %v1266 = vpack.c.b16 %v908, %v906
  %v1267 = vpack.c.b16 %v911, %v909
  %v1268 = vpack.c.b16 %v912, %v910
  %v1269 = vpack.c.b16 %v915, %v913
  %v1270 = vpack.c.b16 %v916, %v914
  %v1271 = vpack.c.b16 %v919, %v917
  %v1272 = vpack.c.b16 %v920, %v918
  %v1273 = vpack.c.b16 %v923, %v921
  %v1274 = vpack.c.b16 %v924, %v922
  %v1275 = vpack.c.b16 %v927, %v925
  %v1276 = vpack.c.b16 %v928, %v926
  %v1277 = vpack.c.b16 %v931, %v929
  %v1278 = vpack.c.b16 %v932, %v930
  %v1279 = vpack.c.b16 %v935, %v933
  %v1280 = vpack.c.b16 %v936, %v934
  %v1281 = vpack.c.b16 %v939, %v937
  %v1282 = vpack.c.b16 %v940, %v938
  %v1283 = vpack.c.b16 %v943, %v941
  %v1284 = vpack.c.b16 %v944, %v942
  %v1285 = vpack.c.b16 %v947, %v945
  %v1286 = vpack.c.b16 %v948, %v946
  %v1287 = vpack.c.b16 %v951, %v949
  %v1288 = vpack.c.b16 %v952, %v950
  %v1289 = vpack.c.b16 %v955, %v953
  %v1290 = vpack.c.b16 %v956, %v954
  %v1291 = vpack.c.b16 %v959, %v957
  %v1292 = vpack.c.b16 %v960, %v958
  %v1293 = vpack.c.b16 %v963, %v961
  %v1294 = vpack.c.b16 %v964, %v962
  %v1295 = vpack.c.b16 %v967, %v965
  %v1296 = vpack.c.b16 %v968, %v966
  %v1297 = vpack.c.b16 %v971, %v969
  %v1298 = vpack.c.b16 %v972, %v970
  %v1299 = vpack.c.b16 %v975, %v973
  %v1300 = vpack.c.b16 %v976, %v974
  %v1301 = vpack.c.b16 %v979, %v977
  %v1302 = vpack.c.b16 %v980, %v978
  %v1303 = vpack.c.b16 %v983, %v981
  %v1304 = vpack.c.b16 %v984, %v982
  %v1305 = vpack.c.b16 %v987, %v985
  %v1306 = vpack.c.b16 %v988, %v986
  %v1307 = vpack.c.b16 %v991, %v989
  %v1308 = vpack.c.b16 %v992, %v990
  %v1309 = vpack.c.b16 %v995, %v993
  %v1310 = vpack.c.b16 %v996, %v994
  %v1311 = vpack.c.b16 %v999, %v997
  %v1312 = vpack.c.b16 %v1000, %v998
  %v1313 = vpack.c.b16 %v1003, %v1001
  %v1314 = vpack.c.b16 %v1004, %v1002
  %v1315 = vpack.c.b16 %v1007, %v1005
  %v1316 = vpack.c.b16 %v1008, %v1006
  %v1317 = vpack.c.b16 %v1011, %v1009
  %v1318 = vpack.c.b16 %v1012, %v1010
  %v1319 = vpack.c.b16 %v1015, %v1013
  %v1320 = vpack.c.b16 %v1016, %v1014
  %v1321 = vpack.c.b16 %v1019, %v1017
  %v1322 = vpack.c.b16 %v1020, %v1018
  %v1323 = vpack.c.b16 %v1023, %v1021
  %v1324 = vpack.c.b16 %v1024, %v1022
  %v1325 = vpack.c.b16 %v1027, %v1025
  %v1326 = vpack.c.b16 %v1028, %v1026
  %v1327 = vpack.c.b16 %v1031, %v1029
  %v1328 = vpack.c.b16 %v1032, %v1030
  %v1329 = vpack.c.b16 %v1035, %v1033
  %v1330 = vpack.c.b16 %v1036, %v1034
  %v1331 = vpack.c.b16 %v1039, %v1037
  %v1332 = vpack.c.b16 %v1040, %v1038
  %v1333 = vpack.c.b16 %v1043, %v1041
  %v1334 = vpack.c.b16 %v1044, %v1042
  %v1335 = vpack.c.b16 %v1047, %v1045
  %v1336 = vpack.c.b16 %v1048, %v1046
  %v1337 = vpack.c.b16 %v1051, %v1049
  %v1338 = vpack.c.b16 %v1052, %v1050
  %v1339 = vpack.c.b16 %v1055, %v1053
  %v1340 = vpack.c.b16 %v1056, %v1054
  %v1341 = vpack.c.b16 %v1059, %v1057
  %v1342 = vpack.c.b16 %v1060, %v1058
  %v1343 = vpack.c.b16 %v1063, %v1061
  %v1344 = vpack.c.b16 %v1064, %v1062
  %v1345 = vpack.c.b16 %v1067, %v1065
  %v1346 = vpack.c.b16 %v1068, %v1066
  %v1347 = vpack.c.b16 %v1071, %v1069
  %v1348 = vpack.c.b16 %v1072, %v1070
  %v1349 = vpack.c.b16 %v1075, %v1073
  %v1350 = vpack.c.b16 %v1076, %v1074
  %v1351 = vpack.c.b16 %v1079, %v1077
  %v1352 = vpack.c.b16 %v1080, %v1078
  %v1353 = vpack.c.b16 %v1083, %v1081
  %v1354 = vpack.c.b16 %v1084, %v1082
  %v1355 = vpack.c.b16 %v1087, %v1085
  %v1356 = vpack.c.b16 %v1088, %v1086
  %v1357 = vpack.c.b16 %v1091, %v1089
  %v1358 = vpack.c.b16 %v1092, %v1090
  %v1359 = vpack.c.b16 %v1095, %v1093
  %v1360 = vpack.c.b16 %v1096, %v1094
  %v1361 = vpack.c.b16 %v1099, %v1097
  %v1362 = vpack.c.b16 %v1100, %v1098
  %v1363 = vpack.c.b16 %v1103, %v1101
  %v1364 = vpack.c.b16 %v1104, %v1102
  %v1365 = vpack.c.b16 %v1107, %v1105
  %v1366 = vpack.c.b16 %v1108, %v1106
  %v1367 = vpack.c.b16 %v1111, %v1109
  %v1368 = vpack.c.b16 %v1112, %v1110
  %1625 = vmatprep.subr.bf16.mxu0 %v1114
  %1626 = vmatpush1.bf16.msra.mxu0 %v1113
  %1627 = vmatprep.subr.bf16.mxu0 %v1116
  %1628 = vmatpush1.bf16.msra.mxu0 %v1115
  %1629 = vmatprep.subr.bf16.mxu0 %v1118
  %1630 = vmatpush1.bf16.msra.mxu0 %v1117
  %1631 = vmatprep.subr.bf16.mxu0 %v1120
  %1632 = vmatpush1.bf16.msra.mxu0 %v1119
  %1633 = vmatprep.subr.bf16.mxu0 %v1122
  %1634 = vmatpush1.bf16.msra.mxu0 %v1121
  %1635 = vmatprep.subr.bf16.mxu0 %v1124
  %1636 = vmatpush1.bf16.msra.mxu0 %v1123
  %1637 = vmatprep.subr.bf16.mxu0 %v1126
  %1638 = vmatpush1.bf16.msra.mxu0 %v1125
  %1639 = vmatprep.subr.bf16.mxu0 %v1128
  %1640 = vmatpush1.bf16.msra.mxu0 %v1127
  %1641 = vmatprep.subr.bf16.mxu0 %v1130
  %1642 = vmatpush1.bf16.msra.mxu0 %v1129
  %1643 = vmatprep.subr.bf16.mxu0 %v1132
  %1644 = vmatpush1.bf16.msra.mxu0 %v1131
  %1645 = vmatprep.subr.bf16.mxu0 %v1134
  %1646 = vmatpush1.bf16.msra.mxu0 %v1133
  %1647 = vmatprep.subr.bf16.mxu0 %v1136
  %1648 = vmatpush1.bf16.msra.mxu0 %v1135
  %1649 = vmatprep.subr.bf16.mxu0 %v1138
  %1650 = vmatpush1.bf16.msra.mxu0 %v1137
  %1651 = vmatprep.subr.bf16.mxu0 %v1140
  %1652 = vmatpush1.bf16.msra.mxu0 %v1139
  %1653 = vmatprep.subr.bf16.mxu0 %v1142
  %1654 = vmatpush1.bf16.msra.mxu0 %v1141
  %1655 = vmatprep.subr.bf16.mxu0 %v1144
  %1656 = vmatpush1.bf16.msra.mxu0 %v1143
  %1657 = vmatprep.mubr.bf16.mxu0 %v314
  %1658 = vmatmul.mubr.bf16.gmra.mrb[0].mxu0 %v313
  %v1659 = vpop.f32.mrb[0].mxu0
  %v1660 = vadd.f32 0.0, %v1659
  %v1661 = vpop.f32.mrb[0].mxu0
  %v1662 = vadd.f32 0.0, %v1661
  %v1663 = vpop.f32.mrb[0].mxu0
  %v1664 = vpop.f32.mrb[0].mxu0
  %1665 = vdwg.mxu0
  %1666 = vmatprep.subr.bf16.mxu0 %v1146
  %1667 = vmatpush1.bf16.msra.mxu0 %v1145
  %1668 = vmatprep.subr.bf16.mxu0 %v1148
  %1669 = vmatpush1.bf16.msra.mxu0 %v1147
  %1670 = vmatprep.subr.bf16.mxu0 %v1150
  %1671 = vmatpush1.bf16.msra.mxu0 %v1149
  %1672 = vmatprep.subr.bf16.mxu0 %v1152
  %1673 = vmatpush1.bf16.msra.mxu0 %v1151
  %1674 = vmatprep.subr.bf16.mxu0 %v1154
  %1675 = vmatpush1.bf16.msra.mxu0 %v1153
  %1676 = vmatprep.subr.bf16.mxu0 %v1156
  %1677 = vmatpush1.bf16.msra.mxu0 %v1155
  %1678 = vmatprep.subr.bf16.mxu0 %v1158
  %1679 = vmatpush1.bf16.msra.mxu0 %v1157
  %1680 = vmatprep.subr.bf16.mxu0 %v1160
  %1681 = vmatpush1.bf16.msra.mxu0 %v1159
  %1682 = vmatprep.subr.bf16.mxu0 %v1162
  %1683 = vmatpush1.bf16.msra.mxu0 %v1161
  %1684 = vmatprep.subr.bf16.mxu0 %v1164
  %1685 = vmatpush1.bf16.msra.mxu0 %v1163
  %1686 = vmatprep.subr.bf16.mxu0 %v1166
  %1687 = vmatpush1.bf16.msra.mxu0 %v1165
  %1688 = vmatprep.subr.bf16.mxu0 %v1168
  %1689 = vmatpush1.bf16.msra.mxu0 %v1167
  %1690 = vmatprep.subr.bf16.mxu0 %v1170
  %1691 = vmatpush1.bf16.msra.mxu0 %v1169
  %1692 = vmatprep.subr.bf16.mxu0 %v1172
  %1693 = vmatpush1.bf16.msra.mxu0 %v1171
  %1694 = vmatprep.subr.bf16.mxu0 %v1174
  %1695 = vmatpush1.bf16.msra.mxu0 %v1173
  %1696 = vmatprep.subr.bf16.mxu0 %v1176
  %1697 = vmatpush1.bf16.msra.mxu0 %v1175
  %1698 = vmatprep.mubr.bf16.mxu0 %v316
  %1699 = vmatmul.mubr.bf16.gmra.mrb[0].mxu0 %v315
  %v1700 = vpop.f32.mrb[0].mxu0
  %v1701 = vadd.f32 %v1660, %v1700
  %v1702 = vpop.f32.mrb[0].mxu0
  %v1703 = vadd.f32 %v1662, %v1702
  %v1704 = vpop.f32.mrb[0].mxu0
  %v1705 = vpop.f32.mrb[0].mxu0
  %1706 = vdwg.mxu0
  %1707 = vmatprep.subr.bf16.mxu0 %v1178
  %1708 = vmatpush1.bf16.msra.mxu0 %v1177
  %1709 = vmatprep.subr.bf16.mxu0 %v1180
  %1710 = vmatpush1.bf16.msra.mxu0 %v1179
  %1711 = vmatprep.subr.bf16.mxu0 %v1182
  %1712 = vmatpush1.bf16.msra.mxu0 %v1181
  %1713 = vmatprep.subr.bf16.mxu0 %v1184
  %1714 = vmatpush1.bf16.msra.mxu0 %v1183
  %1715 = vmatprep.subr.bf16.mxu0 %v1186
  %1716 = vmatpush1.bf16.msra.mxu0 %v1185
  %1717 = vmatprep.subr.bf16.mxu0 %v1188
  %1718 = vmatpush1.bf16.msra.mxu0 %v1187
  %1719 = vmatprep.subr.bf16.mxu0 %v1190
  %1720 = vmatpush1.bf16.msra.mxu0 %v1189
  %1721 = vmatprep.subr.bf16.mxu0 %v1192
  %1722 = vmatpush1.bf16.msra.mxu0 %v1191
  %1723 = vmatprep.subr.bf16.mxu0 %v1194
  %1724 = vmatpush1.bf16.msra.mxu0 %v1193
  %1725 = vmatprep.subr.bf16.mxu0 %v1196
  %1726 = vmatpush1.bf16.msra.mxu0 %v1195
  %1727 = vmatprep.subr.bf16.mxu0 %v1198
  %1728 = vmatpush1.bf16.msra.mxu0 %v1197
  %1729 = vmatprep.subr.bf16.mxu0 %v1200
  %1730 = vmatpush1.bf16.msra.mxu0 %v1199
  %1731 = vmatprep.subr.bf16.mxu0 %v1202
  %1732 = vmatpush1.bf16.msra.mxu0 %v1201
  %1733 = vmatprep.subr.bf16.mxu0 %v1204
  %1734 = vmatpush1.bf16.msra.mxu0 %v1203
  %1735 = vmatprep.subr.bf16.mxu0 %v1206
  %1736 = vmatpush1.bf16.msra.mxu0 %v1205
  %1737 = vmatprep.subr.bf16.mxu0 %v1208
  %1738 = vmatpush1.bf16.msra.mxu0 %v1207
  %1739 = vmatprep.mubr.bf16.mxu0 %v318
  %1740 = vmatmul.mubr.bf16.gmra.mrb[0].mxu0 %v317
  %v1741 = vpop.f32.mrb[0].mxu0
  %v1742 = vadd.f32 %v1701, %v1741
  %v1743 = vpop.f32.mrb[0].mxu0
  %v1744 = vadd.f32 %v1703, %v1743
  %v1745 = vpop.f32.mrb[0].mxu0
  %v1746 = vpop.f32.mrb[0].mxu0
  %1747 = vdwg.mxu0
  %1748 = vmatprep.subr.bf16.mxu0 %v1210
  %1749 = vmatpush1.bf16.msra.mxu0 %v1209
  %1750 = vmatprep.subr.bf16.mxu0 %v1212
  %1751 = vmatpush1.bf16.msra.mxu0 %v1211
  %1752 = vmatprep.subr.bf16.mxu0 %v1214
  %1753 = vmatpush1.bf16.msra.mxu0 %v1213
  %1754 = vmatprep.subr.bf16.mxu0 %v1216
  %1755 = vmatpush1.bf16.msra.mxu0 %v1215
  %1756 = vmatprep.subr.bf16.mxu0 %v1218
  %1757 = vmatpush1.bf16.msra.mxu0 %v1217
  %1758 = vmatprep.subr.bf16.mxu0 %v1220
  %1759 = vmatpush1.bf16.msra.mxu0 %v1219
  %1760 = vmatprep.subr.bf16.mxu0 %v1222
  %1761 = vmatpush1.bf16.msra.mxu0 %v1221
  %1762 = vmatprep.subr.bf16.mxu0 %v1224
  %1763 = vmatpush1.bf16.msra.mxu0 %v1223
  %1764 = vmatprep.subr.bf16.mxu0 %v1226
  %1765 = vmatpush1.bf16.msra.mxu0 %v1225
  %1766 = vmatprep.subr.bf16.mxu0 %v1228
  %1767 = vmatpush1.bf16.msra.mxu0 %v1227
  %1768 = vmatprep.subr.bf16.mxu0 %v1230
  %1769 = vmatpush1.bf16.msra.mxu0 %v1229
  %1770 = vmatprep.subr.bf16.mxu0 %v1232
  %1771 = vmatpush1.bf16.msra.mxu0 %v1231
  %1772 = vmatprep.subr.bf16.mxu0 %v1234
  %1773 = vmatpush1.bf16.msra.mxu0 %v1233
  %1774 = vmatprep.subr.bf16.mxu0 %v1236
  %1775 = vmatpush1.bf16.msra.mxu0 %v1235
  %1776 = vmatprep.subr.bf16.mxu0 %v1238
  %1777 = vmatpush1.bf16.msra.mxu0 %v1237
  %1778 = vmatprep.subr.bf16.mxu0 %v1240
  %1779 = vmatpush1.bf16.msra.mxu0 %v1239
  %1780 = vmatprep.mubr.bf16.mxu0 %v320
  %1781 = vmatmul.mubr.bf16.gmra.mrb[0].mxu0 %v319
  %v1782 = vpop.f32.mrb[0].mxu0
  %v1783 = vadd.f32 %v1742, %v1782
  %v1784 = vpop.f32.mrb[0].mxu0
  %v1785 = vadd.f32 %v1744, %v1784
  %v1786 = vpop.f32.mrb[0].mxu0
  %v1787 = vpop.f32.mrb[0].mxu0
  %1788 = vdwg.mxu0
  %1789 = vmatprep.subr.bf16.mxu0 %v1242
  %1790 = vmatpush1.bf16.msra.mxu0 %v1241
  %1791 = vmatprep.subr.bf16.mxu0 %v1244
  %1792 = vmatpush1.bf16.msra.mxu0 %v1243
  %1793 = vmatprep.subr.bf16.mxu0 %v1246
  %1794 = vmatpush1.bf16.msra.mxu0 %v1245
  %1795 = vmatprep.subr.bf16.mxu0 %v1248
  %1796 = vmatpush1.bf16.msra.mxu0 %v1247
  %1797 = vmatprep.subr.bf16.mxu0 %v1250
  %1798 = vmatpush1.bf16.msra.mxu0 %v1249
  %1799 = vmatprep.subr.bf16.mxu0 %v1252
  %1800 = vmatpush1.bf16.msra.mxu0 %v1251
  %1801 = vmatprep.subr.bf16.mxu0 %v1254
  %1802 = vmatpush1.bf16.msra.mxu0 %v1253
  %1803 = vmatprep.subr.bf16.mxu0 %v1256
  %1804 = vmatpush1.bf16.msra.mxu0 %v1255
  %1805 = vmatprep.subr.bf16.mxu0 %v1258
  %1806 = vmatpush1.bf16.msra.mxu0 %v1257
  %1807 = vmatprep.subr.bf16.mxu0 %v1260
  %1808 = vmatpush1.bf16.msra.mxu0 %v1259
  %1809 = vmatprep.subr.bf16.mxu0 %v1262
  %1810 = vmatpush1.bf16.msra.mxu0 %v1261
  %1811 = vmatprep.subr.bf16.mxu0 %v1264
  %1812 = vmatpush1.bf16.msra.mxu0 %v1263
  %1813 = vmatprep.subr.bf16.mxu0 %v1266
  %1814 = vmatpush1.bf16.msra.mxu0 %v1265
  %1815 = vmatprep.subr.bf16.mxu0 %v1268
  %1816 = vmatpush1.bf16.msra.mxu0 %v1267
  %1817 = vmatprep.subr.bf16.mxu0 %v1270
  %1818 = vmatpush1.bf16.msra.mxu0 %v1269
  %1819 = vmatprep.subr.bf16.mxu0 %v1272
  %1820 = vmatpush1.bf16.msra.mxu0 %v1271
  %1821 = vmatprep.mubr.bf16.mxu0 %v322
  %1822 = vmatmul.mubr.bf16.gmra.mrb[0].mxu0 %v321
  %v1823 = vpop.f32.mrb[0].mxu0
  %v1824 = vadd.f32 %v1783, %v1823
  %v1825 = vpop.f32.mrb[0].mxu0
  %v1826 = vadd.f32 %v1785, %v1825
  %v1827 = vpop.f32.mrb[0].mxu0
  %v1828 = vpop.f32.mrb[0].mxu0
  %1829 = vdwg.mxu0
  %1830 = vmatprep.subr.bf16.mxu0 %v1274
  %1831 = vmatpush1.bf16.msra.mxu0 %v1273
  %1832 = vmatprep.subr.bf16.mxu0 %v1276
  %1833 = vmatpush1.bf16.msra.mxu0 %v1275
  %1834 = vmatprep.subr.bf16.mxu0 %v1278
  %1835 = vmatpush1.bf16.msra.mxu0 %v1277
  %1836 = vmatprep.subr.bf16.mxu0 %v1280
  %1837 = vmatpush1.bf16.msra.mxu0 %v1279
  %1838 = vmatprep.subr.bf16.mxu0 %v1282
  %1839 = vmatpush1.bf16.msra.mxu0 %v1281
  %1840 = vmatprep.subr.bf16.mxu0 %v1284
  %1841 = vmatpush1.bf16.msra.mxu0 %v1283
  %1842 = vmatprep.subr.bf16.mxu0 %v1286
  %1843 = vmatpush1.bf16.msra.mxu0 %v1285
  %1844 = vmatprep.subr.bf16.mxu0 %v1288
  %1845 = vmatpush1.bf16.msra.mxu0 %v1287
  %1846 = vmatprep.subr.bf16.mxu0 %v1290
  %1847 = vmatpush1.bf16.msra.mxu0 %v1289
  %1848 = vmatprep.subr.bf16.mxu0 %v1292
  %1849 = vmatpush1.bf16.msra.mxu0 %v1291
  %1850 = vmatprep.subr.bf16.mxu0 %v1294
  %1851 = vmatpush1.bf16.msra.mxu0 %v1293
  %1852 = vmatprep.subr.bf16.mxu0 %v1296
  %1853 = vmatpush1.bf16.msra.mxu0 %v1295
  %1854 = vmatprep.subr.bf16.mxu0 %v1298
  %1855 = vmatpush1.bf16.msra.mxu0 %v1297
  %1856 = vmatprep.subr.bf16.mxu0 %v1300
  %1857 = vmatpush1.bf16.msra.mxu0 %v1299
  %1858 = vmatprep.subr.bf16.mxu0 %v1302
  %1859 = vmatpush1.bf16.msra.mxu0 %v1301
  %1860 = vmatprep.subr.bf16.mxu0 %v1304
  %1861 = vmatpush1.bf16.msra.mxu0 %v1303
  %1862 = vmatprep.mubr.bf16.mxu0 %v324
  %1863 = vmatmul.mubr.bf16.gmra.mrb[0].mxu0 %v323
  %v1864 = vpop.f32.mrb[0].mxu0
  %v1865 = vadd.f32 %v1824, %v1864
  %v1866 = vpop.f32.mrb[0].mxu0
  %v1867 = vadd.f32 %v1826, %v1866
  %v1868 = vpop.f32.mrb[0].mxu0
  %v1869 = vpop.f32.mrb[0].mxu0
  %1870 = vdwg.mxu0
  %1871 = vmatprep.subr.bf16.mxu0 %v1306
  %1872 = vmatpush1.bf16.msra.mxu0 %v1305
  %1873 = vmatprep.subr.bf16.mxu0 %v1308
  %1874 = vmatpush1.bf16.msra.mxu0 %v1307
  %1875 = vmatprep.subr.bf16.mxu0 %v1310
  %1876 = vmatpush1.bf16.msra.mxu0 %v1309
  %1877 = vmatprep.subr.bf16.mxu0 %v1312
  %1878 = vmatpush1.bf16.msra.mxu0 %v1311
  %1879 = vmatprep.subr.bf16.mxu0 %v1314
  %1880 = vmatpush1.bf16.msra.mxu0 %v1313
  %1881 = vmatprep.subr.bf16.mxu0 %v1316
  %1882 = vmatpush1.bf16.msra.mxu0 %v1315
  %1883 = vmatprep.subr.bf16.mxu0 %v1318
  %1884 = vmatpush1.bf16.msra.mxu0 %v1317
  %1885 = vmatprep.subr.bf16.mxu0 %v1320
  %1886 = vmatpush1.bf16.msra.mxu0 %v1319
  %1887 = vmatprep.subr.bf16.mxu0 %v1322
  %1888 = vmatpush1.bf16.msra.mxu0 %v1321
  %1889 = vmatprep.subr.bf16.mxu0 %v1324
  %1890 = vmatpush1.bf16.msra.mxu0 %v1323
  %1891 = vmatprep.subr.bf16.mxu0 %v1326
  %1892 = vmatpush1.bf16.msra.mxu0 %v1325
  %1893 = vmatprep.subr.bf16.mxu0 %v1328
  %1894 = vmatpush1.bf16.msra.mxu0 %v1327
  %1895 = vmatprep.subr.bf16.mxu0 %v1330
  %1896 = vmatpush1.bf16.msra.mxu0 %v1329
  %1897 = vmatprep.subr.bf16.mxu0 %v1332
  %1898 = vmatpush1.bf16.msra.mxu0 %v1331
  %1899 = vmatprep.subr.bf16.mxu0 %v1334
  %1900 = vmatpush1.bf16.msra.mxu0 %v1333
  %1901 = vmatprep.subr.bf16.mxu0 %v1336
  %1902 = vmatpush1.bf16.msra.mxu0 %v1335
  %1903 = vmatprep.mubr.bf16.mxu0 %v326
  %1904 = vmatmul.mubr.bf16.gmra.mrb[0].mxu0 %v325
  %v1905 = vpop.f32.mrb[0].mxu0
  %v1906 = vadd.f32 %v1865, %v1905
  %v1907 = vpop.f32.mrb[0].mxu0
  %v1908 = vadd.f32 %v1867, %v1907
  %v1909 = vpop.f32.mrb[0].mxu0
  %v1910 = vpop.f32.mrb[0].mxu0
  %1911 = vdwg.mxu0
  %1912 = vmatprep.subr.bf16.mxu0 %v1338
  %1913 = vmatpush1.bf16.msra.mxu0 %v1337
  %1914 = vmatprep.subr.bf16.mxu0 %v1340
  %1915 = vmatpush1.bf16.msra.mxu0 %v1339
  %1916 = vmatprep.subr.bf16.mxu0 %v1342
  %1917 = vmatpush1.bf16.msra.mxu0 %v1341
  %1918 = vmatprep.subr.bf16.mxu0 %v1344
  %1919 = vmatpush1.bf16.msra.mxu0 %v1343
  %1920 = vmatprep.subr.bf16.mxu0 %v1346
  %1921 = vmatpush1.bf16.msra.mxu0 %v1345
  %1922 = vmatprep.subr.bf16.mxu0 %v1348
  %1923 = vmatpush1.bf16.msra.mxu0 %v1347
  %1924 = vmatprep.subr.bf16.mxu0 %v1350
  %1925 = vmatpush1.bf16.msra.mxu0 %v1349
  %1926 = vmatprep.subr.bf16.mxu0 %v1352
  %1927 = vmatpush1.bf16.msra.mxu0 %v1351
  %1928 = vmatprep.subr.bf16.mxu0 %v1354
  %1929 = vmatpush1.bf16.msra.mxu0 %v1353
  %1930 = vmatprep.subr.bf16.mxu0 %v1356
  %1931 = vmatpush1.bf16.msra.mxu0 %v1355
  %1932 = vmatprep.subr.bf16.mxu0 %v1358
  %1933 = vmatpush1.bf16.msra.mxu0 %v1357
  %1934 = vmatprep.subr.bf16.mxu0 %v1360
  %1935 = vmatpush1.bf16.msra.mxu0 %v1359
  %1936 = vmatprep.subr.bf16.mxu0 %v1362
  %1937 = vmatpush1.bf16.msra.mxu0 %v1361
  %1938 = vmatprep.subr.bf16.mxu0 %v1364
  %1939 = vmatpush1.bf16.msra.mxu0 %v1363
  %1940 = vmatprep.subr.bf16.mxu0 %v1366
  %1941 = vmatpush1.bf16.msra.mxu0 %v1365
  %1942 = vmatprep.subr.bf16.mxu0 %v1368
  %1943 = vmatpush1.bf16.msra.mxu0 %v1367
  %1944 = vmatprep.mubr.bf16.mxu0 %v328
  %1945 = vmatmul.mubr.bf16.gmra.mrb[0].mxu0 %v327
  %v1946 = vpop.f32.mrb[0].mxu0
  %v1947 = vadd.f32 %v1906, %v1946
  %v1948 = vpop.f32.mrb[0].mxu0
  %v1949 = vadd.f32 %v1908, %v1948
  %v1950 = vpop.f32.mrb[0].mxu0
  %v1951 = vpop.f32.mrb[0].mxu0
  %1952 = vdwg.mxu0
  %v1953 = vadd.f32 %v23, %v1947
  %v1954 = vadd.f32 %v24, %v1949
  %1955 = vst [vmem:[#allocation2] sm:$0xff] %v1953
  %1956 = vst [vmem:[#allocation2 + $0x8] sm:$0xff] %v1954
  // Predicated region
  $region22: #{forward.1} parent=0 // pred_check
    %p1957 = pneg %p17
  $region23: #{forward.1} parent=0 // pred_check_branch
    %1959 = sbr.rel (%p1957) target = $region25
  $region24: #{forward.1} parent=0 // pred_region
    %v1960 = vld [vmem:[#allocation2] sm:$0xff]
    %v1961 = vld [vmem:[#allocation2 + $0x8] sm:$0xff]
    %v1962 = vld [vmem:[%s2] sm:$0x3]
    %v1964 = vlaneseq
    %v1965 = vshrl.u32 %v1964, 7
    %v1966 = vsub.s32 0, %v1965
    %v1967 = vrot.slane %v1962, %v1966
    %v1968 = vlaneseq
    %v1969 = vshrl.u32 %v1968, 7
    %v1970 = vsub.s32 1, %v1969
    %v1971 = vrot.slane %v1962, %v1970
    %v1974 = vmul.f32 %v1960, %v1967
    %v1975 = vmul.f32 %v1961, %v1971
    %v1976 = vld [vmem:[%s3] sm:$0x3]
    %v1978 = vlaneseq
    %v1979 = vshrl.u32 %v1978, 7
    %v1980 = vsub.s32 0, %v1979
    %v1981 = vrot.slane %v1976, %v1980
    %v1982 = vlaneseq
    %v1983 = vshrl.u32 %v1982, 7
    %v1984 = vsub.s32 1, %v1983
    %v1985 = vrot.slane %v1976, %v1984
    %v1988 = vadd.f32 %v1974, %v1981
    %v1989 = vadd.f32 %v1975, %v1985
    %v1990 = vmax.f32 %v1988, 0.0
    %v1991 = vmax.f32 %v1989, 0.0
    %1992 = vst [vmem:[%s4] sm:$0xff] %v1990
    %1993 = vst [vmem:[%s4 + $0x8] sm:$0xff] %v1991
  $region25: #{forward.1} parent=0 // pred_fallthru
    _
  // Predicated region
  $region26: #{forward.1} parent=0 // pred_check
    _
  $region27: #{forward.1} parent=0 // pred_check_branch
    %1995 = sbr.rel (0) target = $region29
  $region28: #{forward.1} parent=0 // pred_region
    _
  $region29: #{forward.1} parent=0 // pred_fallthru
    _
  // Predicated region
  $region30: #{forward.1} parent=0 // pred_check
    _
  $region31: #{forward.1} parent=0 // pred_check_branch
    %1997 = sbr.rel (0) target = $region33
  $region32: #{forward.1} parent=0 // pred_region
    _
  $region33: #{forward.1} parent=0 // pred_fallthru
    _

</llo_original>
